<compile_context>
chip_gen: v6e
topology: v6e:2x2x1
jax: 0.10.0
libtpu: 0.0.40
codegen_flags: <defaults>
</compile_context>

<pallas_src>
import functools

import jax
import jax.numpy as jnp
from jax.experimental import pallas as pl
from jax.experimental.pallas import tpu as pltpu

NUM_CLASSES = 12


# --------------------------------------------------------------------------
# Pairwise squared distances, pure VPU broadcasting (no degenerate matmuls).
#   a  : (N, 3)   predicted points
#   bt : (3, M)   target points, pre-transposed so rows broadcast along lanes
# --------------------------------------------------------------------------
def _pair_sq_dists(a, bt):
    dx = a[:, 0:1] - bt[0:1, :]          # (N, 1) - (1, M) -> (N, M)
    dy = a[:, 1:2] - bt[1:2, :]
    dz = a[:, 2:3] - bt[2:3, :]
    return dx * dx + dy * dy + dz * dz   # exact squared distances, >= 0


# --------------------------------------------------------------------------
# Pallas kernel 1: fused Chamfer means for all distance-only call sites.
# grid = (B, K); each step emits one scalar  mean_n(min_m d) + mean_m(min_n d).
# --------------------------------------------------------------------------
def _chamfer_mean_kernel(sel_ref, pred_ref, tgt_ref, out_ref):
    del sel_ref                                   # only used by the index_maps
    a = pred_ref[0, 0]                            # (N, 3)
    bt = tgt_ref[0, 0]                            # (3, M)
    n, m = a.shape[0], bt.shape[1]

    d = _pair_sq_dists(a, bt)                     # (N, M)
    row_min = jnp.min(d, axis=1, keepdims=True)   # (N, 1)
    col_min = jnp.min(d, axis=0, keepdims=True)   # (1, M)
    val = (jnp.sum(row_min, axis=0, keepdims=True) / n
           + jnp.sum(col_min, axis=1, keepdims=True) / m)   # (1, 1)
    out_ref[0, 0] = val


def fused_chamfer_means(preds, targets_t, sel):
    """preds (K,B,N,3), targets_t (T,B,3,M), sel (K,) int32 -> (K,B) f32."""
    K, B, N, _ = preds.shape
    M = targets_t.shape[3]
    out = pl.pallas_call(
        _chamfer_mean_kernel,
        out_shape=jax.ShapeDtypeStruct((K, B, 1, 1), jnp.float32),
        grid_spec=pltpu.PrefetchScalarGridSpec(
            num_scalar_prefetch=1,
            grid=(B, K),
            in_specs=[
                pl.BlockSpec((1, 1, N, 3), lambda b, k, sel: (k, b, 0, 0)),
                # target block index only changes when sel[k] or b changes,
                # so gt is DMA'd once per batch element, not once per call.
                pl.BlockSpec((1, 1, 3, M), lambda b, k, sel: (sel[k], b, 0, 0)),
            ],
            out_specs=pl.BlockSpec((1, 1, 1, 1), lambda b, k, sel: (k, b, 0, 0)),
        ),
        compiler_params=pltpu.CompilerParams(
            dimension_semantics=("parallel", "arbitrary")),
    )(sel, preds, targets_t)
    return out[:, :, 0, 0]


# --------------------------------------------------------------------------
# Pallas kernel 2: Chamfer + nearest-neighbour label lookup + label-smoothed
# semantic cross-entropy, fused (only call site that needs idx1).
# --------------------------------------------------------------------------
def _chamfer_sem_kernel(pred_ref, gt_t_ref, lbl_ref, seg_ref, cd_ref, sem_ref):
    a = pred_ref[0]                               # (N, 3)
    bt = gt_t_ref[0]                              # (3, M)
    lbl = lbl_ref[0]                              # (1, M) f32 class ids
    z = seg_ref[0]                                # (N, C) f32 logits
    n, m, c = a.shape[0], bt.shape[1], z.shape[1]

    d = _pair_sq_dists(a, bt)                     # (N, M)
    row_min = jnp.min(d, axis=1, keepdims=True)   # (N, 1)
    col_min = jnp.min(d, axis=0, keepdims=True)   # (1, M)
    cd_ref[0] = (jnp.sum(row_min, axis=0, keepdims=True) / n
                 + jnp.sum(col_min, axis=1, keepdims=True) / m)

    # First-match argmin; exact float equality is valid here because row_min is
    # the min of d computed from the same values inside this kernel.
    col_iota = jax.lax.broadcasted_iota(jnp.int32, (n, m), 1).astype(jnp.float32)
    i1 = jnp.min(jnp.where(d == row_min, col_iota, float(m)),
                 axis=1, keepdims=True)           # (N, 1) nearest-gt index
    first = col_iota == i1                        # exactly one True per row
    labels = jnp.sum(jnp.where(first, lbl, 0.0), axis=1, keepdims=True)  # (N,1)

    # One-hot built in-kernel (no (B, N, 12) one-hot in HBM).
    cls = jax.lax.broadcasted_iota(jnp.int32, (n, c), 1).astype(jnp.float32)
    g = (jnp.abs(labels - cls) < 0.5).astype(jnp.float32)                # (N,C)

    zmax = jnp.max(z, axis=1, keepdims=True)
    e = jnp.exp(z - zmax)
    p = e / jnp.sum(e, axis=1, keepdims=True)     # Softmax(dim=-1)
    term = (0.97 * g * jnp.log(1e-6 + p)
            + (1.0 - 0.97) * (1.0 - g) * jnp.log(1e-6 + 1.0 - p))
    per_pt = -jnp.sum(term, axis=1, keepdims=True)                        # (N,1)
    sem_ref[0] = jnp.sum(per_pt, axis=0, keepdims=True) / n               # (1,1)


def chamfer_sem_fused(pred, gt_t, gt_labels_row, grnet_seg):
    """Returns (chamfer_mean (B,), sem_loss_per_batch (B,))."""
    B, N, _ = pred.shape
    M = gt_t.shape[2]
    C = grnet_seg.shape[2]
    cd, sem = pl.pallas_call(
        _chamfer_sem_kernel,
        out_shape=(jax.ShapeDtypeStruct((B, 1, 1), jnp.float32),
                   jax.ShapeDtypeStruct((B, 1, 1), jnp.float32)),
        grid_spec=pltpu.PrefetchScalarGridSpec(
            num_scalar_prefetch=0,
            grid=(B,),
            in_specs=[
                pl.BlockSpec((1, N, 3), lambda b: (b, 0, 0)),
                pl.BlockSpec((1, 3, M), lambda b: (b, 0, 0)),
                pl.BlockSpec((1, 1, M), lambda b: (b, 0, 0)),
                pl.BlockSpec((1, N, C), lambda b: (b, 0, 0)),
            ],
            out_specs=[
                pl.BlockSpec((1, 1, 1), lambda b: (b, 0, 0)),
                pl.BlockSpec((1, 1, 1), lambda b: (b, 0, 0)),
            ],
        ),
        compiler_params=pltpu.CompilerParams(dimension_semantics=("parallel",)),
    )(pred, gt_t, gt_labels_row, grnet_seg)
    return cd[:, 0, 0], sem[:, 0, 0]


# --------------------------------------------------------------------------
# GriddingLoss (GRNet): trilinear gridding of point clouds + L1 over grids.
# TODO(synk): the data-dependent trilinear scatter-add itself stays in XLA
# (no clean Pallas equivalent); pred (+w) and gt (-w) are fused into a single
# signed scatter per scale so only one diff-grid is ever materialized.
# --------------------------------------------------------------------------
def _corner_updates(pts, scale):
    B, N, _ = pts.shape
    p = pts.astype(jnp.float32) * (scale / 2.0)
    p = jnp.clip(p, -scale / 2.0, scale / 2.0 - 1e-4)
    pf = jnp.floor(p)
    base = (pf + scale // 2).astype(jnp.int32)               # (B, N, 3)
    frac = p - pf                                            # (B, N, 3)
    corners = jnp.array([[dx, dy, dz] for dx in (0, 1) for dy in (0, 1)
                         for dz in (0, 1)], dtype=jnp.int32)[None, None]  # (1,1,8,3)
    idx = jnp.clip(base[:, :, None, :] + corners, 0, scale - 1)          # (B,N,8,3)
    w = jnp.prod(jnp.where(corners == 1, frac[:, :, None, :],
                           1.0 - frac[:, :, None, :]), axis=-1)          # (B,N,8)
    return idx.reshape(B, N * 8, 3), w.reshape(B, N * 8)


def gridding_loss(pred, gt, scales=(64, 128), alphas=(0.1, 0.5)):
    B = pred.shape[0]
    loss = 0.0
    for s, alpha in zip(scales, alphas):
        ip, wp = _corner_updates(pred, s)
        ig, wg = _corner_updates(gt, s)
        idx = jnp.concatenate([ip, ig], axis=1)              # (B, K, 3)
        w = jnp.concatenate([wp, -wg], axis=1)               # (B, K) signed
        bidx = jnp.broadcast_to(jnp.arange(B, dtype=jnp.int32)[:, None], w.shape)
        diff = jnp.zeros((B, s, s, s), jnp.float32).at[
            bidx, idx[..., 0], idx[..., 1], idx[..., 2]].add(w)
        loss = loss + alpha * jnp.mean(jnp.abs(diff))
    return loss


# --------------------------------------------------------------------------
# Deterministic synthetic stand-in for `self.model` (the external backbone).
# --------------------------------------------------------------------------
def init_model_params(key, hidden=32, n_out=128, n_classes=NUM_CLASSES):
    ks = jax.random.split(key, 10)
    w = lambda k, shape: 0.1 * jax.random.normal(k, shape, jnp.float32)
    return {
        "w_enc": w(ks[0], (3, hidden)),
        "w1a": w(ks[1], (hidden, n_out * 3)),
        "w1b": w(ks[2], (hidden, n_out * 3)),
        "w1c": w(ks[3], (hidden, n_out * 3)),
        "w2a": w(ks[4], (hidden, n_out * 3)),
        "w2b": w(ks[5], (hidden, n_out * 3)),
        "w3":  w(ks[6], (hidden, n_out * 3)),
        "w4a": w(ks[7], (hidden, n_out * 3)),
        "w4b": w(ks[8], (hidden, n_out * 4)),     # (xyz + 1 extra feature channel)
        "wseg": w(ks[9], (hidden, n_out * n_classes)),
    }


def synthetic_backbone(params, parts, part_seg):
    del part_seg  # unused by the synthetic stand-in
    B = parts.shape[0]
    feat = jnp.tanh(jnp.einsum("bnd,dh->bnh", parts, params["w_enc"]))
    g = jnp.mean(feat, axis=1)                           # (B, H)
    dec = lambda name, c=3: jnp.tanh(g @ params[name]).reshape(B, -1, c)
    output1 = (dec("w1a"), dec("w1b"), dec("w1c"))
    output2 = (dec("w2a"), dec("w2b"))
    output3 = dec("w3")
    output4 = (dec("w4a"), dec("w4b", c=4))
    grnet_seg = (g @ params["wseg"]).reshape(B, -1, NUM_CLASSES)
    out_seg = grnet_seg                                   # aux output (unused in losses)
    input_chosen = parts
    loss_trans = jnp.mean(g ** 2)
    expansion_penalty = jnp.mean(jnp.abs(g))
    return (output1, output2, output3, output4, out_seg, grnet_seg,
            input_chosen, loss_trans, expansion_penalty)


# --------------------------------------------------------------------------
# FullModel.forward
# --------------------------------------------------------------------------
def full_model_forward(params, parts, gt, part_seg, gt_seg, eps, iters):
    del eps, iters  # EMD module is constructed but never used in the original forward
    (output1, output2, output3, output4, out_seg, grnet_seg,
     input_chosen, loss_trans, expansion_penalty) = synthetic_backbone(
        params, parts, part_seg)
    del out_seg
    part = parts  # original code references undefined `part`; treat as the partial input

    # Targets are tiny; transpose once in XLA so the kernels see (3, M) rows.
    gt_t = jnp.transpose(gt.astype(jnp.float32), (0, 2, 1))       # (B, 3, M)
    part_t = jnp.transpose(part.astype(jnp.float32), (0, 2, 1))   # (B, 3, M)

    # Fuse the seven distance-only chamfer calls into one pallas_call.
    # Slot order chosen so the parts-target is first -> only 2 target DMAs / b.
    preds = jnp.stack([output1[1], output1[0], output1[2],
                       output2[0], output2[1], output3, output4[0]],
                      axis=0).astype(jnp.float32)                 # (7, B, N, 3)
    targets_t = jnp.stack([gt_t, part_t], axis=0)                 # (2, B, 3, M)
    sel = jnp.array([1, 0, 0, 0, 0, 0, 0], jnp.int32)             # which target per slot
    cd = fused_chamfer_means(preds, targets_t, sel)               # (7, B)

    emd1 = cd[1] + cd[0] + cd[2]
    emd2 = cd[3] + cd[4]
    emd3 = cd[5]
    emd4 = cd[6]

    emd4 = emd4 + gridding_loss(output4[0], gt, scales=(64, 128), alphas=(0.1, 0.5))

    # output4[1]-vs-gt chamfer fused with NN-label lookup + semantic CE.
    gt_labels_row = gt_seg[:, :, 0].astype(jnp.float32)[:, None, :]   # (B, 1, M)
    cd4b, sem_pb = chamfer_sem_fused(output4[1][:, :, :3].astype(jnp.float32),
                                     gt_t, gt_labels_row,
                                     grnet_seg.astype(jnp.float32))
    emd4 = emd4 + cd4b
    loss_sem_coarse = jnp.mean(sem_pb)
    emd4 = emd4 + 0.01 * loss_sem_coarse

    return (output1, output2, output3, output4, input_chosen,
            emd1, emd2, emd3, emd4, loss_trans, expansion_penalty)


if __name__ == "__main__":
    key = jax.random.PRNGKey(0)
    k1, k2, k3, k4, kp = jax.random.split(key, 5)

    B, N_IN, N_GT = 2, 128, 128
    parts = jax.random.uniform(k1, (B, N_IN, 3), jnp.float32, -1.0, 1.0)
    gt = jax.random.uniform(k2, (B, N_GT, 3), jnp.float32, -1.0, 1.0)
    part_seg = jax.random.randint(k3, (B, N_IN, 1), 0, NUM_CLASSES).astype(jnp.float32)
    gt_seg = jax.random.randint(k4, (B, N_GT, 1), 0, NUM_CLASSES).astype(jnp.float32)
    params = init_model_params(kp)

    fwd = jax.jit(functools.partial(full_model_forward, params))
    out = fwd(parts, gt, part_seg, gt_seg, 0.005, 50)
    jax.block_until_ready(out)
    print("KERNEL_OK")
</pallas_src>

<mosaic_0001>
module attributes {stable_mosaic.version = 11 : i64} {
  func.func private @main(%arg0: i32) attributes {dimension_semantics = [#tpu.dimension_semantics<core_parallel>], iteration_bounds = array<i64: 2>, tpu.core_type = #tpu.core_type<sc_scalar_subcore>, window_params = []} {
    return
  }
}

module attributes {stable_mosaic.version = 11 : i64} {
  func.func private @main(%arg0: i32) attributes {dimension_semantics = [#tpu.dimension_semantics<core_parallel>], iteration_bounds = array<i64: 2>, tpu.core_type = #tpu.core_type<sc_scalar_subcore>, window_params = []} {
    return
  }
}

module attributes {stable_mosaic.version = 11 : i64} {
  func.func @_chamfer_mean_kernel(%arg0: i32, %arg1: i32, %arg2: memref<7xi32, #tpu.memory_space<smem>>, %arg3: memref<1x1x128x3xf32, #tpu.memory_space<vmem>>, %arg4: memref<1x1x3x128xf32, #tpu.memory_space<vmem>>, %arg5: memref<1x1x1x1xf32, #tpu.memory_space<vmem>>) attributes {dimension_semantics = [#tpu.dimension_semantics<parallel>, #tpu.dimension_semantics<arbitrary>], iteration_bounds = array<i64: 2, 7>, scalar_prefetch = 1 : i64, scratch_operands = 0 : i64, tpu.core_type = #tpu.core_type<tc>, window_params = [{transform_indices = @transform_0, window_bounds = array<i64: 1, 1, 128, 3>}, {transform_indices = @transform_1, window_bounds = array<i64: 1, 1, 3, 128>}, {transform_indices = @transform_2, window_bounds = array<i64: 1, 1, 1, 1>}]} {
    %c0 = arith.constant 0 : index
    %c0_0 = arith.constant 0 : index
    %c0_1 = arith.constant 0 : index
    %c0_2 = arith.constant 0 : index
    %0 = vector.load %arg3[%c0, %c0_0, %c0_1, %c0_2] : memref<1x1x128x3xf32, #tpu.memory_space<vmem>>, vector<1x1x128x3xf32>
    %1 = vector.shape_cast %0 : vector<1x1x128x3xf32> to vector<128x3xf32>
    %c0_3 = arith.constant 0 : index
    %c0_4 = arith.constant 0 : index
    %c0_5 = arith.constant 0 : index
    %c0_6 = arith.constant 0 : index
    %2 = vector.load %arg4[%c0_3, %c0_4, %c0_5, %c0_6] : memref<1x1x3x128xf32, #tpu.memory_space<vmem>>, vector<1x1x3x128xf32>
    %3 = vector.shape_cast %2 : vector<1x1x3x128xf32> to vector<3x128xf32>
    %4 = vector.extract_strided_slice %1 {offsets = [0, 0], sizes = [128, 1], strides = [1, 1]} : vector<128x3xf32> to vector<128x1xf32>
    %5 = vector.extract_strided_slice %3 {offsets = [0, 0], sizes = [1, 128], strides = [1, 1]} : vector<3x128xf32> to vector<1x128xf32>
    %6 = vector.broadcast %4 : vector<128x1xf32> to vector<128x128xf32>
    %7 = vector.broadcast %5 : vector<1x128xf32> to vector<128x128xf32>
    %8 = arith.subf %6, %7 : vector<128x128xf32>
    %9 = vector.extract_strided_slice %1 {offsets = [0, 1], sizes = [128, 1], strides = [1, 1]} : vector<128x3xf32> to vector<128x1xf32>
    %10 = vector.extract_strided_slice %3 {offsets = [1, 0], sizes = [1, 128], strides = [1, 1]} : vector<3x128xf32> to vector<1x128xf32>
    %11 = vector.broadcast %9 : vector<128x1xf32> to vector<128x128xf32>
    %12 = vector.broadcast %10 : vector<1x128xf32> to vector<128x128xf32>
    %13 = arith.subf %11, %12 : vector<128x128xf32>
    %14 = vector.extract_strided_slice %1 {offsets = [0, 2], sizes = [128, 1], strides = [1, 1]} : vector<128x3xf32> to vector<128x1xf32>
    %15 = vector.extract_strided_slice %3 {offsets = [2, 0], sizes = [1, 128], strides = [1, 1]} : vector<3x128xf32> to vector<1x128xf32>
    %16 = vector.broadcast %14 : vector<128x1xf32> to vector<128x128xf32>
    %17 = vector.broadcast %15 : vector<1x128xf32> to vector<128x128xf32>
    %18 = arith.subf %16, %17 : vector<128x128xf32>
    %19 = arith.mulf %8, %8 : vector<128x128xf32>
    %20 = arith.mulf %13, %13 : vector<128x128xf32>
    %21 = arith.addf %19, %20 : vector<128x128xf32>
    %22 = arith.mulf %18, %18 : vector<128x128xf32>
    %23 = arith.addf %21, %22 : vector<128x128xf32>
    %cst = arith.constant dense<0x7F800000> : vector<128xf32>
    %24 = vector.multi_reduction <minimumf>, %23, %cst [1] : vector<128x128xf32> to vector<128xf32>
    %25 = vector.shape_cast %24 : vector<128xf32> to vector<128x1xf32>
    %cst_7 = arith.constant dense<0x7F800000> : vector<128xf32>
    %26 = vector.multi_reduction <minimumf>, %23, %cst_7 [0] : vector<128x128xf32> to vector<128xf32>
    %27 = vector.shape_cast %26 : vector<128xf32> to vector<1x128xf32>
    %cst_8 = arith.constant dense<0.000000e+00> : vector<1xf32>
    %28 = vector.multi_reduction <add>, %25, %cst_8 [0] : vector<128x1xf32> to vector<1xf32>
    %29 = vector.shape_cast %28 : vector<1xf32> to vector<1x1xf32>
    %cst_9 = arith.constant 1.280000e+02 : f32
    %30 = vector.broadcast %cst_9 : f32 to vector<1x1xf32>
    %31 = arith.divf %29, %30 : vector<1x1xf32>
    %cst_10 = arith.constant dense<0.000000e+00> : vector<1xf32>
    %32 = vector.multi_reduction <add>, %27, %cst_10 [1] : vector<1x128xf32> to vector<1xf32>
    %33 = vector.shape_cast %32 : vector<1xf32> to vector<1x1xf32>
    %cst_11 = arith.constant 1.280000e+02 : f32
    %34 = vector.broadcast %cst_11 : f32 to vector<1x1xf32>
    %35 = arith.divf %33, %34 : vector<1x1xf32>
    %36 = arith.addf %31, %35 : vector<1x1xf32>
    %c0_12 = arith.constant 0 : index
    %c0_13 = arith.constant 0 : index
    %c0_14 = arith.constant 0 : index
    %c0_15 = arith.constant 0 : index
    %37 = vector.load %arg5[%c0_12, %c0_13, %c0_14, %c0_15] : memref<1x1x1x1xf32, #tpu.memory_space<vmem>>, vector<1x1x1x1xf32>
    %38 = vector.shape_cast %37 : vector<1x1x1x1xf32> to vector<1x1xf32>
    %39 = vector.shape_cast %36 : vector<1x1xf32> to vector<1x1x1x1xf32>
    tpu.vector_store %arg5[%c0_12, %c0_13, %c0_14, %c0_15], %39 {strides = array<i32>} : memref<1x1x1x1xf32, #tpu.memory_space<vmem>>, vector<1x1x1x1xf32>,
    return
  }
  func.func @transform_0(%arg0: i32, %arg1: i32, %arg2: memref<7xi32, #tpu.memory_space<smem>>) -> (i32, i32, i32, i32) {
    %c0_i32 = arith.constant 0 : i32
    %c0_i32_0 = arith.constant 0 : i32
    %c0_i32_1 = arith.constant 0 : i32
    return %arg1, %arg0, %c0_i32, %c0_i32_0 : i32, i32, i32, i32
  }
  func.func @transform_1(%arg0: i32, %arg1: i32, %arg2: memref<7xi32, #tpu.memory_space<smem>>) -> (i32, i32, i32, i32) {
    %0 = arith.index_cast %arg1 : i32 to index
    %1 = memref.load %arg2[%0] : memref<7xi32, #tpu.memory_space<smem>>
    %c0_i32 = arith.constant 0 : i32
    %c0_i32_0 = arith.constant 0 : i32
    %c0_i32_1 = arith.constant 0 : i32
    return %1, %arg0, %c0_i32, %c0_i32_0 : i32, i32, i32, i32
  }
  func.func @transform_2(%arg0: i32, %arg1: i32, %arg2: memref<7xi32, #tpu.memory_space<smem>>) -> (i32, i32, i32, i32) {
    %c0_i32 = arith.constant 0 : i32
    %c0_i32_0 = arith.constant 0 : i32
    %c0_i32_1 = arith.constant 0 : i32
    return %arg1, %arg0, %c0_i32, %c0_i32_0 : i32, i32, i32, i32
  }
}

module attributes {stable_mosaic.version = 11 : i64} {
  func.func @_chamfer_sem_kernel(%arg0: i32, %arg1: memref<1x128x3xf32, #tpu.memory_space<vmem>>, %arg2: memref<1x3x128xf32, #tpu.memory_space<vmem>>, %arg3: memref<1x1x128xf32, #tpu.memory_space<vmem>>, %arg4: memref<1x128x12xf32, #tpu.memory_space<vmem>>, %arg5: memref<1x1x1xf32, #tpu.memory_space<vmem>>, %arg6: memref<1x1x1xf32, #tpu.memory_space<vmem>>) attributes {dimension_semantics = [#tpu.dimension_semantics<parallel>], iteration_bounds = array<i64: 2>, scalar_prefetch = 0 : i64, scratch_operands = 0 : i64, tpu.core_type = #tpu.core_type<tc>, window_params = [{transform_indices = @transform_0, window_bounds = array<i64: 1, 128, 3>}, {transform_indices = @transform_1, window_bounds = array<i64: 1, 3, 128>}, {transform_indices = @transform_2, window_bounds = array<i64: 1, 1, 128>}, {transform_indices = @transform_3, window_bounds = array<i64: 1, 128, 12>}, {transform_indices = @transform_4, window_bounds = array<i64: 1, 1, 1>}, {transform_indices = @transform_5, window_bounds = array<i64: 1, 1, 1>}]} {
    %c0 = arith.constant 0 : index
    %c0_0 = arith.constant 0 : index
    %c0_1 = arith.constant 0 : index
    %0 = vector.load %arg1[%c0, %c0_0, %c0_1] : memref<1x128x3xf32, #tpu.memory_space<vmem>>, vector<1x128x3xf32>
    %1 = vector.shape_cast %0 : vector<1x128x3xf32> to vector<128x3xf32>
    %c0_2 = arith.constant 0 : index
    %c0_3 = arith.constant 0 : index
    %c0_4 = arith.constant 0 : index
    %2 = vector.load %arg2[%c0_2, %c0_3, %c0_4] : memref<1x3x128xf32, #tpu.memory_space<vmem>>, vector<1x3x128xf32>
    %3 = vector.shape_cast %2 : vector<1x3x128xf32> to vector<3x128xf32>
    %c0_5 = arith.constant 0 : index
    %c0_6 = arith.constant 0 : index
    %c0_7 = arith.constant 0 : index
    %4 = vector.load %arg3[%c0_5, %c0_6, %c0_7] : memref<1x1x128xf32, #tpu.memory_space<vmem>>, vector<1x1x128xf32>
    %5 = vector.shape_cast %4 : vector<1x1x128xf32> to vector<1x128xf32>
    %c0_8 = arith.constant 0 : index
    %c0_9 = arith.constant 0 : index
    %c0_10 = arith.constant 0 : index
    %6 = vector.load %arg4[%c0_8, %c0_9, %c0_10] : memref<1x128x12xf32, #tpu.memory_space<vmem>>, vector<1x128x12xf32>
    %7 = vector.shape_cast %6 : vector<1x128x12xf32> to vector<128x12xf32>
    %8 = vector.extract_strided_slice %1 {offsets = [0, 0], sizes = [128, 1], strides = [1, 1]} : vector<128x3xf32> to vector<128x1xf32>
    %9 = vector.extract_strided_slice %3 {offsets = [0, 0], sizes = [1, 128], strides = [1, 1]} : vector<3x128xf32> to vector<1x128xf32>
    %10 = vector.broadcast %8 : vector<128x1xf32> to vector<128x128xf32>
    %11 = vector.broadcast %9 : vector<1x128xf32> to vector<128x128xf32>
    %12 = arith.subf %10, %11 : vector<128x128xf32>
    %13 = vector.extract_strided_slice %1 {offsets = [0, 1], sizes = [128, 1], strides = [1, 1]} : vector<128x3xf32> to vector<128x1xf32>
    %14 = vector.extract_strided_slice %3 {offsets = [1, 0], sizes = [1, 128], strides = [1, 1]} : vector<3x128xf32> to vector<1x128xf32>
    %15 = vector.broadcast %13 : vector<128x1xf32> to vector<128x128xf32>
    %16 = vector.broadcast %14 : vector<1x128xf32> to vector<128x128xf32>
    %17 = arith.subf %15, %16 : vector<128x128xf32>
    %18 = vector.extract_strided_slice %1 {offsets = [0, 2], sizes = [128, 1], strides = [1, 1]} : vector<128x3xf32> to vector<128x1xf32>
    %19 = vector.extract_strided_slice %3 {offsets = [2, 0], sizes = [1, 128], strides = [1, 1]} : vector<3x128xf32> to vector<1x128xf32>
    %20 = vector.broadcast %18 : vector<128x1xf32> to vector<128x128xf32>
    %21 = vector.broadcast %19 : vector<1x128xf32> to vector<128x128xf32>
    %22 = arith.subf %20, %21 : vector<128x128xf32>
    %23 = arith.mulf %12, %12 : vector<128x128xf32>
    %24 = arith.mulf %17, %17 : vector<128x128xf32>
    %25 = arith.addf %23, %24 : vector<128x128xf32>
    %26 = arith.mulf %22, %22 : vector<128x128xf32>
    %27 = arith.addf %25, %26 : vector<128x128xf32>
    %cst = arith.constant dense<0x7F800000> : vector<128xf32>
    %28 = vector.multi_reduction <minimumf>, %27, %cst [1] : vector<128x128xf32> to vector<128xf32>
    %29 = vector.shape_cast %28 : vector<128xf32> to vector<128x1xf32>
    %cst_11 = arith.constant dense<0x7F800000> : vector<128xf32>
    %30 = vector.multi_reduction <minimumf>, %27, %cst_11 [0] : vector<128x128xf32> to vector<128xf32>
    %31 = vector.shape_cast %30 : vector<128xf32> to vector<1x128xf32>
    %cst_12 = arith.constant dense<0.000000e+00> : vector<1xf32>
    %32 = vector.multi_reduction <add>, %29, %cst_12 [0] : vector<128x1xf32> to vector<1xf32>
    %33 = vector.shape_cast %32 : vector<1xf32> to vector<1x1xf32>
    %cst_13 = arith.constant 1.280000e+02 : f32
    %34 = vector.broadcast %cst_13 : f32 to vector<1x1xf32>
    %35 = arith.divf %33, %34 : vector<1x1xf32>
    %cst_14 = arith.constant dense<0.000000e+00> : vector<1xf32>
    %36 = vector.multi_reduction <add>, %31, %cst_14 [1] : vector<1x128xf32> to vector<1xf32>
    %37 = vector.shape_cast %36 : vector<1xf32> to vector<1x1xf32>
    %cst_15 = arith.constant 1.280000e+02 : f32
    %38 = vector.broadcast %cst_15 : f32 to vector<1x1xf32>
    %39 = arith.divf %37, %38 : vector<1x1xf32>
    %40 = arith.addf %35, %39 : vector<1x1xf32>
    %c0_16 = arith.constant 0 : index
    %c0_17 = arith.constant 0 : index
    %c0_18 = arith.constant 0 : index
    %41 = vector.load %arg5[%c0_16, %c0_17, %c0_18] : memref<1x1x1xf32, #tpu.memory_space<vmem>>, vector<1x1x1xf32>
    %42 = vector.shape_cast %41 : vector<1x1x1xf32> to vector<1x1xf32>
    %43 = vector.shape_cast %40 : vector<1x1xf32> to vector<1x1x1xf32>
    tpu.vector_store %arg5[%c0_16, %c0_17, %c0_18], %43 {strides = array<i32>} : memref<1x1x1xf32, #tpu.memory_space<vmem>>, vector<1x1x1xf32>,
    %44 = tpu.iota {dimensions = array<i32: 1>} : vector<128x128xi32>
    %45 = arith.sitofp %44 : vector<128x128xi32> to vector<128x128xf32>
    %46 = vector.broadcast %29 : vector<128x1xf32> to vector<128x128xf32>
    %47 = arith.cmpf oeq, %27, %46 : vector<128x128xf32>
    %cst_19 = arith.constant 1.280000e+02 : f32
    %48 = vector.broadcast %cst_19 : f32 to vector<128x128xf32>
    %49 = arith.select %47, %45, %48 : vector<128x128xi1>, vector<128x128xf32>
    %cst_20 = arith.constant dense<0x7F800000> : vector<128xf32>
    %50 = vector.multi_reduction <minimumf>, %49, %cst_20 [1] : vector<128x128xf32> to vector<128xf32>
    %51 = vector.shape_cast %50 : vector<128xf32> to vector<128x1xf32>
    %52 = vector.broadcast %51 : vector<128x1xf32> to vector<128x128xf32>
    %53 = arith.cmpf oeq, %45, %52 : vector<128x128xf32>
    %cst_21 = arith.constant 0.000000e+00 : f32
    %54 = vector.shape_cast %5 : vector<1x128xf32> to vector<1x128xf32>
    %55 = vector.broadcast %54 : vector<1x128xf32> to vector<128x128xf32>
    %56 = vector.broadcast %cst_21 : f32 to vector<128x128xf32>
    %57 = arith.select %53, %55, %56 : vector<128x128xi1>, vector<128x128xf32>
    %cst_22 = arith.constant dense<0.000000e+00> : vector<128xf32>
    %58 = vector.multi_reduction <add>, %57, %cst_22 [1] : vector<128x128xf32> to vector<128xf32>
    %59 = vector.shape_cast %58 : vector<128xf32> to vector<128x1xf32>
    %60 = tpu.iota {dimensions = array<i32: 1>} : vector<128x12xi32>
    %61 = arith.sitofp %60 : vector<128x12xi32> to vector<128x12xf32>
    %62 = vector.broadcast %59 : vector<128x1xf32> to vector<128x12xf32>
    %63 = arith.subf %62, %61 : vector<128x12xf32>
    %64 = math.absf %63 : vector<128x12xf32>
    %cst_23 = arith.constant 5.000000e-01 : f32
    %65 = vector.broadcast %cst_23 : f32 to vector<128x12xf32>
    %66 = arith.cmpf olt, %64, %65 : vector<128x12xf32>
    %67 = arith.extui %66 : vector<128x12xi1> to vector<128x12xi32>
    %68 = arith.sitofp %67 : vector<128x12xi32> to vector<128x12xf32>
    %cst_24 = arith.constant dense<0xFF800000> : vector<128xf32>
    %69 = vector.multi_reduction <maximumf>, %7, %cst_24 [1] : vector<128x12xf32> to vector<128xf32>
    %70 = vector.shape_cast %69 : vector<128xf32> to vector<128x1xf32>
    %71 = vector.broadcast %70 : vector<128x1xf32> to vector<128x12xf32>
    %72 = arith.subf %7, %71 : vector<128x12xf32>
    %73 = math.exp %72 : vector<128x12xf32>
    %cst_25 = arith.constant dense<0.000000e+00> : vector<128xf32>
    %74 = vector.multi_reduction <add>, %73, %cst_25 [1] : vector<128x12xf32> to vector<128xf32>
    %75 = vector.shape_cast %74 : vector<128xf32> to vector<128x1xf32>
    %76 = vector.broadcast %75 : vector<128x1xf32> to vector<128x12xf32>
    %77 = arith.divf %73, %76 : vector<128x12xf32>
    %cst_26 = arith.constant 9.700000e-01 : f32
    %78 = vector.broadcast %cst_26 : f32 to vector<128x12xf32>
    %79 = arith.mulf %78, %68 : vector<128x12xf32>
    %cst_27 = arith.constant 9.99999997E-7 : f32
    %80 = vector.broadcast %cst_27 : f32 to vector<128x12xf32>
    %81 = arith.addf %80, %77 : vector<128x12xf32>
    %82 = math.log %81 : vector<128x12xf32>
    %83 = arith.mulf %79, %82 : vector<128x12xf32>
    %cst_28 = arith.constant 1.000000e+00 : f32
    %84 = vector.broadcast %cst_28 : f32 to vector<128x12xf32>
    %85 = arith.subf %84, %68 : vector<128x12xf32>
    %cst_29 = arith.constant 3.000000e-02 : f32
    %86 = vector.broadcast %cst_29 : f32 to vector<128x12xf32>
    %87 = arith.mulf %86, %85 : vector<128x12xf32>
    %cst_30 = arith.constant 1.00000095 : f32
    %88 = vector.broadcast %cst_30 : f32 to vector<128x12xf32>
    %89 = arith.subf %88, %77 : vector<128x12xf32>
    %90 = math.log %89 : vector<128x12xf32>
    %91 = arith.mulf %87, %90 : vector<128x12xf32>
    %92 = arith.addf %83, %91 : vector<128x12xf32>
    %cst_31 = arith.constant dense<0.000000e+00> : vector<128xf32>
    %93 = vector.multi_reduction <add>, %92, %cst_31 [1] : vector<128x12xf32> to vector<128xf32>
    %94 = vector.shape_cast %93 : vector<128xf32> to vector<128x1xf32>
    %cst_32 = arith.constant 0.000000e+00 : f32
    %95 = vector.broadcast %cst_32 : f32 to vector<128x1xf32>
    %96 = arith.subf %95, %94 : vector<128x1xf32>
    %cst_33 = arith.constant dense<0.000000e+00> : vector<1xf32>
    %97 = vector.multi_reduction <add>, %96, %cst_33 [0] : vector<128x1xf32> to vector<1xf32>
    %98 = vector.shape_cast %97 : vector<1xf32> to vector<1x1xf32>
    %cst_34 = arith.constant 1.280000e+02 : f32
    %99 = vector.broadcast %cst_34 : f32 to vector<1x1xf32>
    %100 = arith.divf %98, %99 : vector<1x1xf32>
    %c0_35 = arith.constant 0 : index
    %c0_36 = arith.constant 0 : index
    %c0_37 = arith.constant 0 : index
    %101 = vector.load %arg6[%c0_35, %c0_36, %c0_37] : memref<1x1x1xf32, #tpu.memory_space<vmem>>, vector<1x1x1xf32>
    %102 = vector.shape_cast %101 : vector<1x1x1xf32> to vector<1x1xf32>
    %103 = vector.shape_cast %100 : vector<1x1xf32> to vector<1x1x1xf32>
    tpu.vector_store %arg6[%c0_35, %c0_36, %c0_37], %103 {strides = array<i32>} : memref<1x1x1xf32, #tpu.memory_space<vmem>>, vector<1x1x1xf32>,
    return
  }
  func.func @transform_0(%arg0: i32) -> (i32, i32, i32) {
    %c0_i32 = arith.constant 0 : i32
    %c0_i32_0 = arith.constant 0 : i32
    %c0_i32_1 = arith.constant 0 : i32
    return %arg0, %c0_i32, %c0_i32_0 : i32, i32, i32
  }
  func.func @transform_1(%arg0: i32) -> (i32, i32, i32) {
    %c0_i32 = arith.constant 0 : i32
    %c0_i32_0 = arith.constant 0 : i32
    %c0_i32_1 = arith.constant 0 : i32
    return %arg0, %c0_i32, %c0_i32_0 : i32, i32, i32
  }
  func.func @transform_2(%arg0: i32) -> (i32, i32, i32) {
    %c0_i32 = arith.constant 0 : i32
    %c0_i32_0 = arith.constant 0 : i32
    %c0_i32_1 = arith.constant 0 : i32
    return %arg0, %c0_i32, %c0_i32_0 : i32, i32, i32
  }
  func.func @transform_3(%arg0: i32) -> (i32, i32, i32) {
    %c0_i32 = arith.constant 0 : i32
    %c0_i32_0 = arith.constant 0 : i32
    %c0_i32_1 = arith.constant 0 : i32
    return %arg0, %c0_i32, %c0_i32_0 : i32, i32, i32
  }
  func.func @transform_4(%arg0: i32) -> (i32, i32, i32) {
    %c0_i32 = arith.constant 0 : i32
    %c0_i32_0 = arith.constant 0 : i32
    %c0_i32_1 = arith.constant 0 : i32
    return %arg0, %c0_i32, %c0_i32_0 : i32, i32, i32
  }
  func.func @transform_5(%arg0: i32) -> (i32, i32, i32) {
    %c0_i32 = arith.constant 0 : i32
    %c0_i32_0 = arith.constant 0 : i32
    %c0_i32_1 = arith.constant 0 : i32
    return %arg0, %c0_i32, %c0_i32_0 : i32, i32, i32
  }
}

</mosaic_0001>

<llo_original>
// kernel: neg.0
$region0: #{neg.0}
  #allocation0 [shape = 's32[1]{0}', space=sflag, size = 0x4, scoped, tag = 'scoped memory for neg.0']
  %s0 = inlined_call_operand.vmem [shape: f32[2,128,8], index: 0, kind: input, shape index: {}]
  %s1 = inlined_call_operand.vmem [shape: f32[2,128,8], index: 1, kind: output, shape index: {}]
  %v2 = vld [vmem:[%s0] sm:$0xff]
  %3 = xla_tuple %v2
  %4 = xla_tuple %3
  %v5 = vxor.u32 %v2, 2147483648
  %6 = xla_tuple %v5
  %7 = vst [vmem:[%s1] sm:$0xff] %v5
  %s8 = scalar_lea.vmem %s0, 8
  %v9 = vld [vmem:[%s8] sm:$0xff]
  %10 = xla_tuple %v9
  %11 = xla_tuple %10
  %v12 = vxor.u32 %v9, 2147483648
  %13 = xla_tuple %v12
  %s14 = scalar_lea.vmem %s1, 8
  %15 = vst [vmem:[%s14] sm:$0xff] %v12

// kernel: full_model_forward.2
$region0: #{full_model_forward.2}
  #allocation0 [shape = 'u32[]', space=smem, size = 0x4, offset = 0x4, fixed_abs, tag = 'smem constant byte address 0x4 - core index']
  #allocation1 [shape = 'u32[144,128]{1,0:T(1,128)}', space=vmem, size = 0x12000, scoped, tag = 'internal scratch']
  #allocation2 [shape = 's32[1]{0}', space=sflag, size = 0x4, scoped, tag = 'scoped memory for full_model_forward.2']
  #allocation3 [shape = 'u8[512]{0}', space=smem, size = 0x200, scoped, tag = 'prefetched SMEM operand 0']
  %s0 = inlined_call_operand.hbm [shape: s32[7], index: 0, kind: input, shape index: {}]
  %s1 = inlined_call_operand.vmem [shape: f32[7,2,128,3], index: 1, kind: input, shape index: {}]
  %s2 = inlined_call_operand.vmem [shape: f32[2,2,3,128], index: 2, kind: input, shape index: {}]
  %s3 = inlined_call_operand.vmem [shape: f32[7,2,1,1], index: 3, kind: output, shape index: {}]
  %s4 = sld [smem:[#allocation0]]
  $region41: #{full_model_forward.2} parent=0
    _
  %s6 = ssub.s32 1, %s4
  %s7 = scalar_select 0, %s6, %s4
  %9 = dma.hbm_to_smem %s0, 16, [#allocation3], [#allocation2]
  %10 = dma.done [#allocation2], 16
  %11 = sfence
  loop: start=0, step=1, limit=16
  $region2: #{full_model_forward.2} parent=0 // loop_pre_header
    _
  $region3: #{full_model_forward.2} parent=0 // loop_header
    %s13 = sphi 0, %s17
    %p14 = scmp.ge.s32.totalorder %s13, 16
    %s20 = sphi 0, %s32
    %s21 = sphi 0, %s28
    %s22 = sphi 0, %s20
    %s23 = sphi 0, %s21
    %s24 = sphi 0, %s22
    %s25 = sphi 0, %s23
    %s37 = sphi 0, %s39
    %s40 = sphi 0, %s37
    %s41 = sphi 0, %s40
    %s57 = sphi 0, %s41
    %s67 = sphi 0, %s69
    %s70 = sphi 0, %s67
    %s71 = sphi 0, %s70
    %s87 = sphi 0, %s71
    %s95 = sphi 0, %s97
    %s98 = sphi 0, %s95
    %s99 = sphi 0, %s98
    %s115 = sphi 0, %s99
  $region4: #{full_model_forward.2} parent=0 // loop_header_branch
    %16 = sbr.rel (%p14) target = $region8
  $region5: #{full_model_forward.2} parent=0 // loop_body
    %s18 = ssub.s32 %s13, 1
    %s19 = ssub.s32 %s13, 2
    %s26 = sadd.s32 1, %s21
    %p27 = scmp.ge.s32.totalorder %s26, 7
    %s28 = scalar_select %p27, 0, %s26
    %s29 = sadd.s32 1, %s20
    %s30 = scalar_select %p27, %s29, %s20
    %p31 = scmp.ge.s32.totalorder %s30, 2
    %s32 = scalar_select %p31, 0, %s30
    %s33 = ssub.s32 %s21, %s28
    %s34 = ssub.s32 %s20, %s32
    %s35 = sor.u32 %s33, %s34
    %p36 = scmp.eq.s32.totalorder %s35, 0
    %s38 = sadd.s32 %s37, 1
    %s39 = scalar_select %p36, %s37, %s38
    %p42 = pneg %p36
    %p43 = scmp.eq.s32.totalorder %s13, 13
    %p44 = por %p42, %p43
    %p45 = scmp.ne.s32.totalorder %s37, %s40
    %p46 = scmp.eq.s32.totalorder %s13, 0
    %p47 = por %p45, %p46
    %p48 = scmp.ne.s32.totalorder %s37, %s40
    %p49 = scmp.eq.s32.totalorder %s18, 13
    %p50 = por %p48, %p49
    %p51 = scmp.ne.s32.totalorder %s40, %s41
    %p52 = scmp.eq.s32.totalorder %s18, 0
    %p53 = por %p51, %p52
    %p54 = scmp.ne.s32.totalorder %s40, %s41
    %p55 = scmp.eq.s32.totalorder %s19, 13
    %p56 = por %p54, %p55
    %p58 = scmp.ne.s32.totalorder %s41, %s57
    %p59 = scmp.eq.s32.totalorder %s19, 0
    %p60 = por %p58, %p59
    %s61 = sld [smem:[#allocation3 + %s21]]
    %s62 = sld [smem:[#allocation3 + %s28]]
    %s63 = ssub.s32 %s61, %s62
    %s64 = ssub.s32 %s20, %s32
    %s65 = sor.u32 %s63, %s64
    %p66 = scmp.eq.s32.totalorder %s65, 0
    %s68 = sadd.s32 %s67, 1
    %s69 = scalar_select %p66, %s67, %s68
    %p72 = pneg %p66
    %p73 = scmp.eq.s32.totalorder %s13, 13
    %p74 = por %p72, %p73
    %p75 = scmp.ne.s32.totalorder %s67, %s70
    %p76 = scmp.eq.s32.totalorder %s13, 0
    %p77 = por %p75, %p76
    %p78 = scmp.ne.s32.totalorder %s67, %s70
    %p79 = scmp.eq.s32.totalorder %s18, 13
    %p80 = por %p78, %p79
    %p81 = scmp.ne.s32.totalorder %s70, %s71
    %p82 = scmp.eq.s32.totalorder %s18, 0
    %p83 = por %p81, %p82
    %p84 = scmp.ne.s32.totalorder %s70, %s71
    %p85 = scmp.eq.s32.totalorder %s19, 13
    %p86 = por %p84, %p85
    %p88 = scmp.ne.s32.totalorder %s71, %s87
    %p89 = scmp.eq.s32.totalorder %s19, 0
    %p90 = por %p88, %p89
    %s91 = ssub.s32 %s21, %s28
    %s92 = ssub.s32 %s20, %s32
    %s93 = sor.u32 %s91, %s92
    %p94 = scmp.eq.s32.totalorder %s93, 0
    %s96 = sadd.s32 %s95, 1
    %s97 = scalar_select %p94, %s95, %s96
    %p100 = pneg %p94
    %p101 = scmp.eq.s32.totalorder %s13, 13
    %p102 = por %p100, %p101
    %p103 = scmp.ne.s32.totalorder %s95, %s98
    %p104 = scmp.eq.s32.totalorder %s13, 0
    %p105 = por %p103, %p104
    %p106 = scmp.ne.s32.totalorder %s95, %s98
    %p107 = scmp.eq.s32.totalorder %s18, 13
    %p108 = por %p106, %p107
    %p109 = scmp.ne.s32.totalorder %s98, %s99
    %p110 = scmp.eq.s32.totalorder %s18, 0
    %p111 = por %p109, %p110
    %p112 = scmp.ne.s32.totalorder %s98, %s99
    %p113 = scmp.eq.s32.totalorder %s19, 13
    %p114 = por %p112, %p113
    %p116 = scmp.ne.s32.totalorder %s99, %s115
    %p117 = scmp.eq.s32.totalorder %s19, 0
    %p118 = por %p116, %p117
    %p119 = scmp.le.s32.totalorder 1, %s13
    %p120 = scmp.lt.s32.totalorder %s13, 15
    %p121 = pnand %p119, %p120
    %p122 = pneg %p121
    // Predicated region
    $region9: #{full_model_forward.2} parent=5 // pred_check
      _
    $region10: #{full_model_forward.2} parent=5 // pred_check_branch
      %124 = sbr.rel (%p121) target = $region12
    $region11: #{full_model_forward.2} parent=5 // pred_region
      %s125 = ssub.s32 %s13, 1
    $region12: #{full_model_forward.2} parent=5 // pred_fallthru
      _
    %p126 = scmp.lt.s32.totalorder %s13, 14
    // Predicated region
    $region13: #{full_model_forward.2} parent=5 // pred_check
      %p127 = pneg %p126
    $region14: #{full_model_forward.2} parent=5 // pred_check_branch
      %129 = sbr.rel (%p127) target = $region16
    $region15: #{full_model_forward.2} parent=5 // pred_region
      // Predicated region
      $region17: #{full_model_forward.2} parent=15 // pred_check
        %p130 = pneg %p47
      $region18: #{full_model_forward.2} parent=15 // pred_check_branch
        %132 = sbr.rel (%p130) target = $region20
      $region19: #{full_model_forward.2} parent=15 // pred_region
        %p133 = scmp.lt.s32.totalorder %s21, 6
        %s134 = scalar_select %p133, %s21, 6
        %p135 = scmp.lt.s32.totalorder %s20, 1
        %s136 = scalar_select %p135, %s20, 1
        %s137 = smul.addr %s136, 16
        %s138 = smul.addr %s134, 32
        %s139 = sadd.s32 %s137, %s138
        %s140 = smul.addr %s139, 8
        %s141 = scalar_lea.vmem %s1, %s140
      $region20: #{full_model_forward.2} parent=15 // pred_fallthru
        _
      // Predicated region
      $region21: #{full_model_forward.2} parent=15 // pred_check
        %p142 = pneg %p77
      $region22: #{full_model_forward.2} parent=15 // pred_check_branch
        %144 = sbr.rel (%p142) target = $region24
      $region23: #{full_model_forward.2} parent=15 // pred_region
        %s145 = sld [smem:[#allocation3 + %s21]]
        %p146 = scmp.lt.s32.totalorder %s145, 1
        %s147 = scalar_select %p146, %s145, 1
        %p148 = scmp.lt.s32.totalorder %s20, 1
        %s149 = scalar_select %p148, %s20, 1
        %s150 = smul.addr %s147, 2
        %s151 = sadd.s32 %s149, %s150
        %s152 = smul.addr %s151, 4
        %s153 = scalar_lea.vmem %s2, %s152
        %s154 = sld [smem:[#allocation3 + %s21]]
      $region24: #{full_model_forward.2} parent=15 // pred_fallthru
        _
    $region16: #{full_model_forward.2} parent=5 // pred_fallthru
      _
    %p155 = scmp.le.s32.totalorder 1, %s13
    %p156 = scmp.lt.s32.totalorder %s13, 15
    %p157 = pnand %p155, %p156
    %p158 = pneg %p157
    // Predicated region
    $region25: #{full_model_forward.2} parent=5 // pred_check
      _
    $region26: #{full_model_forward.2} parent=5 // pred_check_branch
      %160 = sbr.rel (%p157) target = $region28
    $region27: #{full_model_forward.2} parent=5 // pred_region
      %s161 = ssub.s32 %s13, 1
      %p162 = scmp.lt.s32.totalorder %s23, 6
      %s163 = scalar_select %p162, %s23, 6
      %p164 = scmp.lt.s32.totalorder %s22, 1
      %s165 = scalar_select %p164, %s22, 1
      %s166 = smul.addr %s165, 16
      %s167 = smul.addr %s163, 32
      %s168 = sadd.s32 %s166, %s167
      %s169 = smul.addr %s168, 8
      %s170 = scalar_lea.vmem %s1, %s169
      %p171 = pneg %p53
      %p172 = pneg %p50
      %s173 = sld [smem:[#allocation3 + %s23]]
      %p174 = scmp.lt.s32.totalorder %s173, 1
      %s175 = scalar_select %p174, %s173, 1
      %p176 = scmp.lt.s32.totalorder %s22, 1
      %s177 = scalar_select %p176, %s22, 1
      %s178 = smul.addr %s175, 2
      %s179 = sadd.s32 %s177, %s178
      %s180 = smul.addr %s179, 4
      %s181 = scalar_lea.vmem %s2, %s180
      %p182 = pneg %p83
      %p183 = pneg %p80
      %p184 = pneg %p111
      %p185 = pneg %p108
      %p186 = scmp.lt.s32.totalorder %s23, 6
      %s187 = scalar_select %p186, %s23, 6
      %p188 = scmp.lt.s32.totalorder %s22, 1
      %s189 = scalar_select %p188, %s22, 1
      %s190 = smul.addr %s187, 2
      %s191 = sadd.s32 %s189, %s190
      %s192 = scalar_lea.vmem %s3, %s191
      %p193 = scmp.lt.s32.totalorder %s23, 6
      %s194 = scalar_select %p193, %s23, 6
      %p195 = scmp.lt.s32.totalorder %s22, 1
      %s196 = scalar_select %p195, %s22, 1
      %s197 = smul.addr %s196, 16
      %s198 = smul.addr %s194, 32
      %s199 = sadd.s32 %s197, %s198
      %s200 = smul.addr %s199, 8
      %s201 = scalar_lea.vmem %s1, %s200
      %s202 = sld [smem:[#allocation3 + %s23]]
      %p203 = scmp.lt.s32.totalorder %s202, 1
      %s204 = scalar_select %p203, %s202, 1
      %p205 = scmp.lt.s32.totalorder %s22, 1
      %s206 = scalar_select %p205, %s22, 1
      %s207 = smul.addr %s204, 2
      %s208 = sadd.s32 %s206, %s207
      %s209 = smul.addr %s208, 4
      %s210 = scalar_lea.vmem %s2, %s209
      %s211 = sld [smem:[#allocation3 + %s23]]
      %p212 = scmp.lt.s32.totalorder %s23, 6
      %s213 = scalar_select %p212, %s23, 6
      %p214 = scmp.lt.s32.totalorder %s22, 1
      %s215 = scalar_select %p214, %s22, 1
      %s216 = smul.addr %s213, 2
      %s217 = sadd.s32 %s215, %s216
      %s218 = scalar_lea.vmem %s3, %s217
      %v219 = vld [vmem:[%s201] sm:$0xff]
      %v220 = vld [vmem:[%s201 + $0x8] sm:$0xff]
      %v221 = vld [vmem:[%s201 + $0x10] sm:$0xff]
      %v222 = vld [vmem:[%s201 + $0x18] sm:$0xff]
      %v223 = vld [vmem:[%s201 + $0x20] sm:$0xff]
      %v224 = vld [vmem:[%s201 + $0x28] sm:$0xff]
      %v225 = vld [vmem:[%s201 + $0x30] sm:$0xff]
      %v226 = vld [vmem:[%s201 + $0x38] sm:$0xff]
      %v227 = vld [vmem:[%s201 + $0x40] sm:$0xff]
      %v228 = vld [vmem:[%s201 + $0x48] sm:$0xff]
      %v229 = vld [vmem:[%s201 + $0x50] sm:$0xff]
      %v230 = vld [vmem:[%s201 + $0x58] sm:$0xff]
      %v231 = vld [vmem:[%s201 + $0x60] sm:$0xff]
      %v232 = vld [vmem:[%s201 + $0x68] sm:$0xff]
      %v233 = vld [vmem:[%s201 + $0x70] sm:$0xff]
      %v234 = vld [vmem:[%s201 + $0x78] sm:$0xff]
      %v235 = vld [vmem:[%s210] sm:$0x7]
      %237 = vset.pattern.permute.xlu0 0
      %238 = vperm.xlu0 %237, %v219
      %v239 = vpop.permute.xlu0 %238
      %242 = vset.pattern.permute.xlu0 0
      %243 = vperm.xlu0 %242, %v220
      %v244 = vpop.permute.xlu0 %243
      %247 = vset.pattern.permute.xlu0 0
      %248 = vperm.xlu0 %247, %v221
      %v249 = vpop.permute.xlu0 %248
      %252 = vset.pattern.permute.xlu0 0
      %253 = vperm.xlu0 %252, %v222
      %v254 = vpop.permute.xlu0 %253
      %257 = vset.pattern.permute.xlu0 0
      %258 = vperm.xlu0 %257, %v223
      %v259 = vpop.permute.xlu0 %258
      %262 = vset.pattern.permute.xlu0 0
      %263 = vperm.xlu0 %262, %v224
      %v264 = vpop.permute.xlu0 %263
      %267 = vset.pattern.permute.xlu0 0
      %268 = vperm.xlu0 %267, %v225
      %v269 = vpop.permute.xlu0 %268
      %272 = vset.pattern.permute.xlu0 0
      %273 = vperm.xlu0 %272, %v226
      %v274 = vpop.permute.xlu0 %273
      %277 = vset.pattern.permute.xlu0 0
      %278 = vperm.xlu0 %277, %v227
      %v279 = vpop.permute.xlu0 %278
      %282 = vset.pattern.permute.xlu0 0
      %283 = vperm.xlu0 %282, %v228
      %v284 = vpop.permute.xlu0 %283
      %287 = vset.pattern.permute.xlu0 0
      %288 = vperm.xlu0 %287, %v229
      %v289 = vpop.permute.xlu0 %288
      %292 = vset.pattern.permute.xlu0 0
      %293 = vperm.xlu0 %292, %v230
      %v294 = vpop.permute.xlu0 %293
      %297 = vset.pattern.permute.xlu0 0
      %298 = vperm.xlu0 %297, %v231
      %v299 = vpop.permute.xlu0 %298
      %302 = vset.pattern.permute.xlu0 0
      %303 = vperm.xlu0 %302, %v232
      %v304 = vpop.permute.xlu0 %303
      %307 = vset.pattern.permute.xlu0 0
      %308 = vperm.xlu0 %307, %v233
      %v309 = vpop.permute.xlu0 %308
      %312 = vset.pattern.permute.xlu0 0
      %313 = vperm.xlu0 %312, %v234
      %v314 = vpop.permute.xlu0 %313
      %v316 = vlaneseq
      %v317 = vshrl.u32 %v316, 7
      %v318 = vsub.s32 0, %v317
      %v319 = vrot.slane %v235, %v318
      %v320 = vsub.f32 %v239, %v319
      %v321 = vsub.f32 %v244, %v319
      %v322 = vsub.f32 %v249, %v319
      %v323 = vsub.f32 %v254, %v319
      %v324 = vsub.f32 %v259, %v319
      %v325 = vsub.f32 %v264, %v319
      %v326 = vsub.f32 %v269, %v319
      %v327 = vsub.f32 %v274, %v319
      %v328 = vsub.f32 %v279, %v319
      %v329 = vsub.f32 %v284, %v319
      %v330 = vsub.f32 %v289, %v319
      %v331 = vsub.f32 %v294, %v319
      %v332 = vsub.f32 %v299, %v319
      %v333 = vsub.f32 %v304, %v319
      %v334 = vsub.f32 %v309, %v319
      %v335 = vsub.f32 %v314, %v319
      %336 = vset.pattern.permute.xlu0 1
      %337 = vperm.xlu0 %336, %v219
      %v338 = vpop.permute.xlu0 %337
      %340 = vset.pattern.permute.xlu0 1
      %341 = vperm.xlu0 %340, %v220
      %v342 = vpop.permute.xlu0 %341
      %344 = vset.pattern.permute.xlu0 1
      %345 = vperm.xlu0 %344, %v221
      %v346 = vpop.permute.xlu0 %345
      %348 = vset.pattern.permute.xlu0 1
      %349 = vperm.xlu0 %348, %v222
      %v350 = vpop.permute.xlu0 %349
      %352 = vset.pattern.permute.xlu0 1
      %353 = vperm.xlu0 %352, %v223
      %v354 = vpop.permute.xlu0 %353
      %356 = vset.pattern.permute.xlu0 1
      %357 = vperm.xlu0 %356, %v224
      %v358 = vpop.permute.xlu0 %357
      %360 = vset.pattern.permute.xlu0 1
      %361 = vperm.xlu0 %360, %v225
      %v362 = vpop.permute.xlu0 %361
      %364 = vset.pattern.permute.xlu0 1
      %365 = vperm.xlu0 %364, %v226
      %v366 = vpop.permute.xlu0 %365
      %368 = vset.pattern.permute.xlu0 1
      %369 = vperm.xlu0 %368, %v227
      %v370 = vpop.permute.xlu0 %369
      %372 = vset.pattern.permute.xlu0 1
      %373 = vperm.xlu0 %372, %v228
      %v374 = vpop.permute.xlu0 %373
      %376 = vset.pattern.permute.xlu0 1
      %377 = vperm.xlu0 %376, %v229
      %v378 = vpop.permute.xlu0 %377
      %380 = vset.pattern.permute.xlu0 1
      %381 = vperm.xlu0 %380, %v230
      %v382 = vpop.permute.xlu0 %381
      %384 = vset.pattern.permute.xlu0 1
      %385 = vperm.xlu0 %384, %v231
      %v386 = vpop.permute.xlu0 %385
      %388 = vset.pattern.permute.xlu0 1
      %389 = vperm.xlu0 %388, %v232
      %v390 = vpop.permute.xlu0 %389
      %392 = vset.pattern.permute.xlu0 1
      %393 = vperm.xlu0 %392, %v233
      %v394 = vpop.permute.xlu0 %393
      %396 = vset.pattern.permute.xlu0 1
      %397 = vperm.xlu0 %396, %v234
      %v398 = vpop.permute.xlu0 %397
      %v400 = vlaneseq
      %v401 = vshrl.u32 %v400, 7
      %v402 = vsub.s32 1, %v401
      %v403 = vrot.slane %v235, %v402
      %v404 = vsub.f32 %v338, %v403
      %v405 = vsub.f32 %v342, %v403
      %v406 = vsub.f32 %v346, %v403
      %v407 = vsub.f32 %v350, %v403
      %v408 = vsub.f32 %v354, %v403
      %v409 = vsub.f32 %v358, %v403
      %v410 = vsub.f32 %v362, %v403
      %v411 = vsub.f32 %v366, %v403
      %v412 = vsub.f32 %v370, %v403
      %v413 = vsub.f32 %v374, %v403
      %v414 = vsub.f32 %v378, %v403
      %v415 = vsub.f32 %v382, %v403
      %v416 = vsub.f32 %v386, %v403
      %v417 = vsub.f32 %v390, %v403
      %v418 = vsub.f32 %v394, %v403
      %v419 = vsub.f32 %v398, %v403
      %420 = vset.pattern.permute.xlu0 2
      %421 = vperm.xlu0 %420, %v219
      %v422 = vpop.permute.xlu0 %421
      %424 = vset.pattern.permute.xlu0 2
      %425 = vperm.xlu0 %424, %v220
      %v426 = vpop.permute.xlu0 %425
      %428 = vset.pattern.permute.xlu0 2
      %429 = vperm.xlu0 %428, %v221
      %v430 = vpop.permute.xlu0 %429
      %432 = vset.pattern.permute.xlu0 2
      %433 = vperm.xlu0 %432, %v222
      %v434 = vpop.permute.xlu0 %433
      %436 = vset.pattern.permute.xlu0 2
      %437 = vperm.xlu0 %436, %v223
      %v438 = vpop.permute.xlu0 %437
      %440 = vset.pattern.permute.xlu0 2
      %441 = vperm.xlu0 %440, %v224
      %v442 = vpop.permute.xlu0 %441
      %444 = vset.pattern.permute.xlu0 2
      %445 = vperm.xlu0 %444, %v225
      %v446 = vpop.permute.xlu0 %445
      %448 = vset.pattern.permute.xlu0 2
      %449 = vperm.xlu0 %448, %v226
      %v450 = vpop.permute.xlu0 %449
      %452 = vset.pattern.permute.xlu0 2
      %453 = vperm.xlu0 %452, %v227
      %v454 = vpop.permute.xlu0 %453
      %456 = vset.pattern.permute.xlu0 2
      %457 = vperm.xlu0 %456, %v228
      %v458 = vpop.permute.xlu0 %457
      %460 = vset.pattern.permute.xlu0 2
      %461 = vperm.xlu0 %460, %v229
      %v462 = vpop.permute.xlu0 %461
      %464 = vset.pattern.permute.xlu0 2
      %465 = vperm.xlu0 %464, %v230
      %v466 = vpop.permute.xlu0 %465
      %468 = vset.pattern.permute.xlu0 2
      %469 = vperm.xlu0 %468, %v231
      %v470 = vpop.permute.xlu0 %469
      %472 = vset.pattern.permute.xlu0 2
      %473 = vperm.xlu0 %472, %v232
      %v474 = vpop.permute.xlu0 %473
      %476 = vset.pattern.permute.xlu0 2
      %477 = vperm.xlu0 %476, %v233
      %v478 = vpop.permute.xlu0 %477
      %480 = vset.pattern.permute.xlu0 2
      %481 = vperm.xlu0 %480, %v234
      %v482 = vpop.permute.xlu0 %481
      %v484 = vlaneseq
      %v485 = vshrl.u32 %v484, 7
      %v486 = vsub.s32 2, %v485
      %v487 = vrot.slane %v235, %v486
      %v488 = vsub.f32 %v422, %v487
      %v489 = vsub.f32 %v426, %v487
      %v490 = vsub.f32 %v430, %v487
      %v491 = vsub.f32 %v434, %v487
      %v492 = vsub.f32 %v438, %v487
      %v493 = vsub.f32 %v442, %v487
      %v494 = vsub.f32 %v446, %v487
      %v495 = vsub.f32 %v450, %v487
      %v496 = vsub.f32 %v454, %v487
      %v497 = vsub.f32 %v458, %v487
      %v498 = vsub.f32 %v462, %v487
      %v499 = vsub.f32 %v466, %v487
      %v500 = vsub.f32 %v470, %v487
      %v501 = vsub.f32 %v474, %v487
      %v502 = vsub.f32 %v478, %v487
      %v503 = vsub.f32 %v482, %v487
      %v504 = vmul.f32 %v320, %v320
      %v505 = vmul.f32 %v321, %v321
      %v506 = vmul.f32 %v322, %v322
      %v507 = vmul.f32 %v323, %v323
      %v508 = vmul.f32 %v324, %v324
      %v509 = vmul.f32 %v325, %v325
      %v510 = vmul.f32 %v326, %v326
      %v511 = vmul.f32 %v327, %v327
      %v512 = vmul.f32 %v328, %v328
      %v513 = vmul.f32 %v329, %v329
      %v514 = vmul.f32 %v330, %v330
      %v515 = vmul.f32 %v331, %v331
      %v516 = vmul.f32 %v332, %v332
      %v517 = vmul.f32 %v333, %v333
      %v518 = vmul.f32 %v334, %v334
      %v519 = vmul.f32 %v335, %v335
      %v520 = vmul.f32 %v404, %v404
      %v521 = vmul.f32 %v405, %v405
      %v522 = vmul.f32 %v406, %v406
      %v523 = vmul.f32 %v407, %v407
      %v524 = vmul.f32 %v408, %v408
      %v525 = vmul.f32 %v409, %v409
      %v526 = vmul.f32 %v410, %v410
      %v527 = vmul.f32 %v411, %v411
      %v528 = vmul.f32 %v412, %v412
      %v529 = vmul.f32 %v413, %v413
      %v530 = vmul.f32 %v414, %v414
      %v531 = vmul.f32 %v415, %v415
      %v532 = vmul.f32 %v416, %v416
      %v533 = vmul.f32 %v417, %v417
      %v534 = vmul.f32 %v418, %v418
      %v535 = vmul.f32 %v419, %v419
      %v536 = vadd.f32 %v504, %v520
      %v537 = vadd.f32 %v505, %v521
      %v538 = vadd.f32 %v506, %v522
      %v539 = vadd.f32 %v507, %v523
      %v540 = vadd.f32 %v508, %v524
      %v541 = vadd.f32 %v509, %v525
      %v542 = vadd.f32 %v510, %v526
      %v543 = vadd.f32 %v511, %v527
      %v544 = vadd.f32 %v512, %v528
      %v545 = vadd.f32 %v513, %v529
      %v546 = vadd.f32 %v514, %v530
      %v547 = vadd.f32 %v515, %v531
      %v548 = vadd.f32 %v516, %v532
      %v549 = vadd.f32 %v517, %v533
      %v550 = vadd.f32 %v518, %v534
      %v551 = vadd.f32 %v519, %v535
      %v552 = vmul.f32 %v488, %v488
      %v553 = vmul.f32 %v489, %v489
      %v554 = vmul.f32 %v490, %v490
      %v555 = vmul.f32 %v491, %v491
      %v556 = vmul.f32 %v492, %v492
      %v557 = vmul.f32 %v493, %v493
      %v558 = vmul.f32 %v494, %v494
      %v559 = vmul.f32 %v495, %v495
      %v560 = vmul.f32 %v496, %v496
      %v561 = vmul.f32 %v497, %v497
      %v562 = vmul.f32 %v498, %v498
      %v563 = vmul.f32 %v499, %v499
      %v564 = vmul.f32 %v500, %v500
      %v565 = vmul.f32 %v501, %v501
      %v566 = vmul.f32 %v502, %v502
      %v567 = vmul.f32 %v503, %v503
      %v568 = vadd.f32 %v536, %v552
      %v569 = vadd.f32 %v537, %v553
      %v570 = vadd.f32 %v538, %v554
      %v571 = vadd.f32 %v539, %v555
      %v572 = vadd.f32 %v540, %v556
      %v573 = vadd.f32 %v541, %v557
      %v574 = vadd.f32 %v542, %v558
      %v575 = vadd.f32 %v543, %v559
      %v576 = vadd.f32 %v544, %v560
      %v577 = vadd.f32 %v545, %v561
      %v578 = vadd.f32 %v546, %v562
      %v579 = vadd.f32 %v547, %v563
      %v580 = vadd.f32 %v548, %v564
      %v581 = vadd.f32 %v549, %v565
      %v582 = vadd.f32 %v550, %v566
      %v583 = vadd.f32 %v551, %v567
      %584 = vmin.xlane.f32.xlu0 %v568
      %v585 = vpop.xlane.xlu0 %584
      %586 = vmin.xlane.f32.xlu0 %v569
      %v587 = vpop.xlane.xlu0 %586
      %588 = vmin.xlane.f32.xlu0 %v570
      %v589 = vpop.xlane.xlu0 %588
      %590 = vmin.xlane.f32.xlu0 %v571
      %v591 = vpop.xlane.xlu0 %590
      %592 = vmin.xlane.f32.xlu0 %v572
      %v593 = vpop.xlane.xlu0 %592
      %594 = vmin.xlane.f32.xlu0 %v573
      %v595 = vpop.xlane.xlu0 %594
      %596 = vmin.xlane.f32.xlu0 %v574
      %v597 = vpop.xlane.xlu0 %596
      %598 = vmin.xlane.f32.xlu0 %v575
      %v599 = vpop.xlane.xlu0 %598
      %600 = vmin.xlane.f32.xlu0 %v576
      %v601 = vpop.xlane.xlu0 %600
      %602 = vmin.xlane.f32.xlu0 %v577
      %v603 = vpop.xlane.xlu0 %602
      %604 = vmin.xlane.f32.xlu0 %v578
      %v605 = vpop.xlane.xlu0 %604
      %606 = vmin.xlane.f32.xlu0 %v579
      %v607 = vpop.xlane.xlu0 %606
      %608 = vmin.xlane.f32.xlu0 %v580
      %v609 = vpop.xlane.xlu0 %608
      %610 = vmin.xlane.f32.xlu0 %v581
      %v611 = vpop.xlane.xlu0 %610
      %612 = vmin.xlane.f32.xlu0 %v582
      %v613 = vpop.xlane.xlu0 %612
      %614 = vmin.xlane.f32.xlu0 %v583
      %v615 = vpop.xlane.xlu0 %614
      %v616 = vmin.f32 %v568, %v572
      %v617 = vmin.f32 %v569, %v573
      %v618 = vmin.f32 %v570, %v574
      %v619 = vmin.f32 %v571, %v575
      %v620 = vmin.f32 %v616, %v576
      %v621 = vmin.f32 %v617, %v577
      %v622 = vmin.f32 %v618, %v578
      %v623 = vmin.f32 %v619, %v579
      %v624 = vmin.f32 %v620, %v580
      %v625 = vmin.f32 %v621, %v581
      %v626 = vmin.f32 %v622, %v582
      %v627 = vmin.f32 %v623, %v583
      %v628 = vmin.f32 %v624, %v625
      %v629 = vmin.f32 %v626, %v627
      %v630 = vmin.f32 %v628, %v629
      %v631 = vrot.slane %v630, 4
      %v632 = vmin.f32 %v630, %v631
      %v633 = vrot.slane %v632, 2
      %v634 = vmin.f32 %v632, %v633
      %v635 = vrot.slane %v634, 1
      %v636 = vmin.f32 %v634, %v635
      %v637 = vadd.f32 %v585, %v587
      %v638 = vadd.f32 %v637, %v589
      %v639 = vadd.f32 %v638, %v591
      %v640 = vadd.f32 %v639, %v593
      %v641 = vadd.f32 %v640, %v595
      %v642 = vadd.f32 %v641, %v597
      %v643 = vadd.f32 %v642, %v599
      %v644 = vadd.f32 %v643, %v601
      %v645 = vadd.f32 %v644, %v603
      %v646 = vadd.f32 %v645, %v605
      %v647 = vadd.f32 %v646, %v607
      %v648 = vadd.f32 %v647, %v609
      %v649 = vadd.f32 %v648, %v611
      %v650 = vadd.f32 %v649, %v613
      %v651 = vadd.f32 %v650, %v615
      %v652 = vrot.slane %v651, 4
      %v653 = vadd.f32 %v651, %v652
      %v654 = vrot.slane %v653, 2
      %v655 = vadd.f32 %v653, %v654
      %v656 = vrot.slane %v655, 1
      %v657 = vadd.f32 %v655, %v656
      %v658 = vrcp.pop 128.0
      %v659 = vmul.f32 %v657, %v658
      %660 = vadd.xlane.f32.xlu0 %v636
      %v661 = vpop.xlane.xlu0 %660
      %v662 = vmul.f32 %v661, %v658
      %v663 = vadd.f32 %v659, %v662
      %vm664 = vcmask 0
      %665 = vst.msk [vmem:[%s218] sm:$0x1] %vm664, %v663
      %p666 = scmp.lt.s32.totalorder %s23, 6
      %s667 = scalar_select %p666, %s23, 6
      %p668 = scmp.lt.s32.totalorder %s22, 1
      %s669 = scalar_select %p668, %s22, 1
      %s670 = smul.addr %s667, 2
      %s671 = sadd.s32 %s669, %s670
      %s672 = scalar_lea.vmem %s3, %s671
      // Predicated region
      $region29: #{full_model_forward.2} parent=27 // pred_check
        %p673 = pneg %p108
      $region30: #{full_model_forward.2} parent=27 // pred_check_branch
        %675 = sbr.rel (%p673) target = $region32
      $region31: #{full_model_forward.2} parent=27 // pred_region
        _
      $region32: #{full_model_forward.2} parent=27 // pred_fallthru
        _
    $region28: #{full_model_forward.2} parent=5 // pred_fallthru
      _
    %p676 = scmp.le.s32.totalorder 2, %s13
    // Predicated region
    $region33: #{full_model_forward.2} parent=5 // pred_check
      %p677 = pneg %p676
    $region34: #{full_model_forward.2} parent=5 // pred_check_branch
      %679 = sbr.rel (%p677) target = $region36
    $region35: #{full_model_forward.2} parent=5 // pred_region
      %s680 = ssub.s32 %s13, 2
      // Predicated region
      $region37: #{full_model_forward.2} parent=35 // pred_check
        %p681 = pneg %p114
      $region38: #{full_model_forward.2} parent=35 // pred_check_branch
        %683 = sbr.rel (%p681) target = $region40
      $region39: #{full_model_forward.2} parent=35 // pred_region
        %p684 = scmp.lt.s32.totalorder %s25, 6
        %s685 = scalar_select %p684, %s25, 6
        %p686 = scmp.lt.s32.totalorder %s24, 1
        %s687 = scalar_select %p686, %s24, 1
        %s688 = smul.addr %s685, 2
        %s689 = sadd.s32 %s687, %s688
        %s690 = scalar_lea.vmem %s3, %s689
      $region40: #{full_model_forward.2} parent=35 // pred_fallthru
        _
    $region36: #{full_model_forward.2} parent=5 // pred_fallthru
      _
  $region6: #{full_model_forward.2} parent=0 // loop_footer
    %s17 = sadd.s32 1, %s13
  $region7: #{full_model_forward.2} parent=0 // loop_footer_branch
    %12 = sbr.rel target = $region3
  $region8: #{full_model_forward.2} parent=0 // loop_exit
    _

// kernel: full_model_forward.3
$region0: #{full_model_forward.3}
  #allocation0 [shape = 'u32[]', space=smem, size = 0x4, offset = 0x4, fixed_abs, tag = 'smem constant byte address 0x4 - core index']
  #allocation1 [shape = 'u32[144,128]{1,0:T(1,128)}', space=vmem, size = 0x12000, scoped, tag = 'internal scratch']
  %s0 = inlined_call_operand.vmem [shape: f32[2,128,3], index: 0, kind: input, shape index: {}]
  %s1 = inlined_call_operand.vmem [shape: f32[2,3,128], index: 1, kind: input, shape index: {}]
  %s2 = inlined_call_operand.hbm [shape: f32[2,1,128], index: 2, kind: input, shape index: {}]
  %s3 = inlined_call_operand.vmem [shape: f32[2,128,12], index: 3, kind: input, shape index: {}]
  %s4 = inlined_call_operand.vmem [shape: f32[2,1,1], index: 4, kind: output, shape index: {0}]
  %s5 = inlined_call_operand.vmem [shape: f32[2,1,1], index: 5, kind: output, shape index: {1}]
  %6 = xla_tuple %s4, %s5
  %s7 = sld [smem:[#allocation0]]
  $region61: #{full_model_forward.3} parent=0
    _
  %s9 = ssub.s32 1, %s7
  %s10 = scalar_select 0, %s9, %s7
  $region1: #{full_model_forward.3} parent=0
    #allocation2 [shape = 'u8[1024]{0}', space=vmem, size = 0x400, scoped, tag = 'input window, operand 2']
    #allocation3 [shape = 's32[2]{0}', space=sflag, size = 0x8, scoped, tag = 'scoped memory for full_model_forward.3']
    %11 = vsyncpa [#allocation3], 0
    %s12 = scalar_lea.sflag [#allocation3], 1
    %13 = vsyncpa %s12, 0
    loop: start=0, step=1, limit=4
    $region2: #{full_model_forward.3} parent=1 // loop_pre_header
      _
    $region3: #{full_model_forward.3} parent=1 // loop_header
      %s15 = sphi 0, %s19
      %p16 = scmp.ge.s32.totalorder %s15, 4
      %s25 = sphi 0, %s27
      %s28 = sphi 0, %s25
      %s29 = sphi 0, %s28
      %s45 = sphi 0, %s29
      %s51 = sphi 0, %s53
      %s54 = sphi 0, %s51
      %s55 = sphi 0, %s54
      %s71 = sphi 0, %s55
      %s77 = sphi 0, %s79
      %s80 = sphi 0, %s77
      %s81 = sphi 0, %s80
      %s97 = sphi 0, %s81
      %s103 = sphi 0, %s105
      %s106 = sphi 0, %s103
      %s107 = sphi 0, %s106
      %s123 = sphi 0, %s107
      %s129 = sphi 0, %s131
      %s132 = sphi 0, %s129
      %s133 = sphi 0, %s132
      %s149 = sphi 0, %s133
      %s155 = sphi 0, %s157
      %s158 = sphi 0, %s155
      %s159 = sphi 0, %s158
      %s175 = sphi 0, %s159
    $region4: #{full_model_forward.3} parent=1 // loop_header_branch
      %18 = sbr.rel (%p16) target = $region8
    $region5: #{full_model_forward.3} parent=1 // loop_body
      %s20 = ssub.s32 %s15, 1
      %s21 = ssub.s32 %s15, 2
      %s22 = sadd.s32 %s15, 1
      %s23 = ssub.s32 %s15, %s22
      %p24 = scmp.eq.s32.totalorder %s23, 0
      %s26 = sadd.s32 %s25, 1
      %s27 = scalar_select %p24, %s25, %s26
      %p30 = pneg %p24
      %p31 = scmp.eq.s32.totalorder %s15, 1
      %p32 = por %p30, %p31
      %p33 = scmp.ne.s32.totalorder %s25, %s28
      %p34 = scmp.eq.s32.totalorder %s15, 0
      %p35 = por %p33, %p34
      %p36 = scmp.ne.s32.totalorder %s25, %s28
      %p37 = scmp.eq.s32.totalorder %s20, 1
      %p38 = por %p36, %p37
      %p39 = scmp.ne.s32.totalorder %s28, %s29
      %p40 = scmp.eq.s32.totalorder %s20, 0
      %p41 = por %p39, %p40
      %p42 = scmp.ne.s32.totalorder %s28, %s29
      %p43 = scmp.eq.s32.totalorder %s21, 1
      %p44 = por %p42, %p43
      %p46 = scmp.ne.s32.totalorder %s29, %s45
      %p47 = scmp.eq.s32.totalorder %s21, 0
      %p48 = por %p46, %p47
      %s49 = ssub.s32 %s15, %s22
      %p50 = scmp.eq.s32.totalorder %s49, 0
      %s52 = sadd.s32 %s51, 1
      %s53 = scalar_select %p50, %s51, %s52
      %p56 = pneg %p50
      %p57 = scmp.eq.s32.totalorder %s15, 1
      %p58 = por %p56, %p57
      %p59 = scmp.ne.s32.totalorder %s51, %s54
      %p60 = scmp.eq.s32.totalorder %s15, 0
      %p61 = por %p59, %p60
      %p62 = scmp.ne.s32.totalorder %s51, %s54
      %p63 = scmp.eq.s32.totalorder %s20, 1
      %p64 = por %p62, %p63
      %p65 = scmp.ne.s32.totalorder %s54, %s55
      %p66 = scmp.eq.s32.totalorder %s20, 0
      %p67 = por %p65, %p66
      %p68 = scmp.ne.s32.totalorder %s54, %s55
      %p69 = scmp.eq.s32.totalorder %s21, 1
      %p70 = por %p68, %p69
      %p72 = scmp.ne.s32.totalorder %s55, %s71
      %p73 = scmp.eq.s32.totalorder %s21, 0
      %p74 = por %p72, %p73
      %s75 = ssub.s32 %s15, %s22
      %p76 = scmp.eq.s32.totalorder %s75, 0
      %s78 = sadd.s32 %s77, 1
      %s79 = scalar_select %p76, %s77, %s78
      %p82 = pneg %p76
      %p83 = scmp.eq.s32.totalorder %s15, 1
      %p84 = por %p82, %p83
      %p85 = scmp.ne.s32.totalorder %s77, %s80
      %p86 = scmp.eq.s32.totalorder %s15, 0
      %p87 = por %p85, %p86
      %p88 = scmp.ne.s32.totalorder %s77, %s80
      %p89 = scmp.eq.s32.totalorder %s20, 1
      %p90 = por %p88, %p89
      %p91 = scmp.ne.s32.totalorder %s80, %s81
      %p92 = scmp.eq.s32.totalorder %s20, 0
      %p93 = por %p91, %p92
      %p94 = scmp.ne.s32.totalorder %s80, %s81
      %p95 = scmp.eq.s32.totalorder %s21, 1
      %p96 = por %p94, %p95
      %p98 = scmp.ne.s32.totalorder %s81, %s97
      %p99 = scmp.eq.s32.totalorder %s21, 0
      %p100 = por %p98, %p99
      %s101 = ssub.s32 %s15, %s22
      %p102 = scmp.eq.s32.totalorder %s101, 0
      %s104 = sadd.s32 %s103, 1
      %s105 = scalar_select %p102, %s103, %s104
      %p108 = pneg %p102
      %p109 = scmp.eq.s32.totalorder %s15, 1
      %p110 = por %p108, %p109
      %p111 = scmp.ne.s32.totalorder %s103, %s106
      %p112 = scmp.eq.s32.totalorder %s15, 0
      %p113 = por %p111, %p112
      %p114 = scmp.ne.s32.totalorder %s103, %s106
      %p115 = scmp.eq.s32.totalorder %s20, 1
      %p116 = por %p114, %p115
      %p117 = scmp.ne.s32.totalorder %s106, %s107
      %p118 = scmp.eq.s32.totalorder %s20, 0
      %p119 = por %p117, %p118
      %p120 = scmp.ne.s32.totalorder %s106, %s107
      %p121 = scmp.eq.s32.totalorder %s21, 1
      %p122 = por %p120, %p121
      %p124 = scmp.ne.s32.totalorder %s107, %s123
      %p125 = scmp.eq.s32.totalorder %s21, 0
      %p126 = por %p124, %p125
      %s127 = ssub.s32 %s15, %s22
      %p128 = scmp.eq.s32.totalorder %s127, 0
      %s130 = sadd.s32 %s129, 1
      %s131 = scalar_select %p128, %s129, %s130
      %p134 = pneg %p128
      %p135 = scmp.eq.s32.totalorder %s15, 1
      %p136 = por %p134, %p135
      %p137 = scmp.ne.s32.totalorder %s129, %s132
      %p138 = scmp.eq.s32.totalorder %s15, 0
      %p139 = por %p137, %p138
      %p140 = scmp.ne.s32.totalorder %s129, %s132
      %p141 = scmp.eq.s32.totalorder %s20, 1
      %p142 = por %p140, %p141
      %p143 = scmp.ne.s32.totalorder %s132, %s133
      %p144 = scmp.eq.s32.totalorder %s20, 0
      %p145 = por %p143, %p144
      %p146 = scmp.ne.s32.totalorder %s132, %s133
      %p147 = scmp.eq.s32.totalorder %s21, 1
      %p148 = por %p146, %p147
      %p150 = scmp.ne.s32.totalorder %s133, %s149
      %p151 = scmp.eq.s32.totalorder %s21, 0
      %p152 = por %p150, %p151
      %s153 = ssub.s32 %s15, %s22
      %p154 = scmp.eq.s32.totalorder %s153, 0
      %s156 = sadd.s32 %s155, 1
      %s157 = scalar_select %p154, %s155, %s156
      %p160 = pneg %p154
      %p161 = scmp.eq.s32.totalorder %s15, 1
      %p162 = por %p160, %p161
      %p163 = scmp.ne.s32.totalorder %s155, %s158
      %p164 = scmp.eq.s32.totalorder %s15, 0
      %p165 = por %p163, %p164
      %p166 = scmp.ne.s32.totalorder %s155, %s158
      %p167 = scmp.eq.s32.totalorder %s20, 1
      %p168 = por %p166, %p167
      %p169 = scmp.ne.s32.totalorder %s158, %s159
      %p170 = scmp.eq.s32.totalorder %s20, 0
      %p171 = por %p169, %p170
      %p172 = scmp.ne.s32.totalorder %s158, %s159
      %p173 = scmp.eq.s32.totalorder %s21, 1
      %p174 = por %p172, %p173
      %p176 = scmp.ne.s32.totalorder %s159, %s175
      %p177 = scmp.eq.s32.totalorder %s21, 0
      %p178 = por %p176, %p177
      %p179 = scmp.le.s32.totalorder 1, %s15
      %p180 = scmp.lt.s32.totalorder %s15, 3
      %p181 = pnand %p179, %p180
      %p182 = pneg %p181
      // Predicated region
      $region9: #{full_model_forward.3} parent=5 // pred_check
        _
      $region10: #{full_model_forward.3} parent=5 // pred_check_branch
        %184 = sbr.rel (%p181) target = $region12
      $region11: #{full_model_forward.3} parent=5 // pred_region
        %s185 = ssub.s32 %s15, 1
      $region12: #{full_model_forward.3} parent=5 // pred_fallthru
        _
      %p186 = scmp.lt.s32.totalorder %s15, 2
      // Predicated region
      $region13: #{full_model_forward.3} parent=5 // pred_check
        %p187 = pneg %p186
      $region14: #{full_model_forward.3} parent=5 // pred_check_branch
        %189 = sbr.rel (%p187) target = $region16
      $region15: #{full_model_forward.3} parent=5 // pred_region
        // Predicated region
        $region17: #{full_model_forward.3} parent=15 // pred_check
          %p190 = pneg %p35
        $region18: #{full_model_forward.3} parent=15 // pred_check_branch
          %192 = sbr.rel (%p190) target = $region20
        $region19: #{full_model_forward.3} parent=15 // pred_region
          %p193 = scmp.lt.s32.totalorder %s15, 1
          %s194 = scalar_select %p193, %s15, 1
          %s195 = smul.addr %s194, 16
          %s196 = smul.addr %s195, 8
          %s197 = scalar_lea.vmem %s0, %s196
        $region20: #{full_model_forward.3} parent=15 // pred_fallthru
          _
        // Predicated region
        $region21: #{full_model_forward.3} parent=15 // pred_check
          %p198 = pneg %p61
        $region22: #{full_model_forward.3} parent=15 // pred_check_branch
          %200 = sbr.rel (%p198) target = $region24
        $region23: #{full_model_forward.3} parent=15 // pred_region
          %p201 = scmp.lt.s32.totalorder %s15, 1
          %s202 = scalar_select %p201, %s15, 1
          %s203 = smul.addr %s202, 4
          %s204 = scalar_lea.vmem %s1, %s203
        $region24: #{full_model_forward.3} parent=15 // pred_fallthru
          _
        // Predicated region
        $region25: #{full_model_forward.3} parent=15 // pred_check
          %p205 = pneg %p87
        $region26: #{full_model_forward.3} parent=15 // pred_check_branch
          %207 = sbr.rel (%p205) target = $region28
        $region27: #{full_model_forward.3} parent=15 // pred_region
          %s208 = sand.u32 %s77, 1
          %s209 = scalar_lea.sflag [#allocation3], %s208
          %s210 = sand.u32 %s77, 1
          %s211 = scalar_lea.vmem [#allocation2], %s210
          %s213 = ssub.s32 16, 16
          %214 = vsyncadd %s209, %s213
          %s215 = smul.addr %s15, 16
          %s216 = scalar_lea.hbm %s2, %s215
          %s218 = sshll.u32 %s211, 4
          %s219 = int_to_ptr.vmem [resolvable:$true] %s218
          %221 = dma.hbm_to_vmem [thread:$0]  %s216, 16, %s219, %s209
        $region28: #{full_model_forward.3} parent=15 // pred_fallthru
          _
        // Predicated region
        $region29: #{full_model_forward.3} parent=15 // pred_check
          %p222 = pneg %p113
        $region30: #{full_model_forward.3} parent=15 // pred_check_branch
          %224 = sbr.rel (%p222) target = $region32
        $region31: #{full_model_forward.3} parent=15 // pred_region
          %p225 = scmp.lt.s32.totalorder %s15, 1
          %s226 = scalar_select %p225, %s15, 1
          %s227 = smul.addr %s226, 16
          %s228 = smul.addr %s227, 8
          %s229 = scalar_lea.vmem %s3, %s228
        $region32: #{full_model_forward.3} parent=15 // pred_fallthru
          _
      $region16: #{full_model_forward.3} parent=5 // pred_fallthru
        _
      %p230 = scmp.le.s32.totalorder 1, %s15
      %p231 = scmp.lt.s32.totalorder %s15, 3
      %p232 = pnand %p230, %p231
      %p233 = pneg %p232
      // Predicated region
      $region33: #{full_model_forward.3} parent=5 // pred_check
        _
      $region34: #{full_model_forward.3} parent=5 // pred_check_branch
        %235 = sbr.rel (%p232) target = $region36
      $region35: #{full_model_forward.3} parent=5 // pred_region
        %s236 = ssub.s32 %s15, 1
        %s237 = sand.u32 %s80, 1
        %s238 = scalar_lea.sflag [#allocation3], %s237
        %s239 = sand.u32 %s80, 1
        %s240 = scalar_lea.vmem [#allocation2], %s239
        // Predicated region
        $region37: #{full_model_forward.3} parent=35 // pred_check
          %p241 = pneg %p93
        $region38: #{full_model_forward.3} parent=35 // pred_check_branch
          %243 = sbr.rel (%p241) target = $region40
        $region39: #{full_model_forward.3} parent=35 // pred_region
          %244 = dma.done %s238, 16
        $region40: #{full_model_forward.3} parent=35 // pred_fallthru
          _
        %p245 = scmp.lt.s32.totalorder %s20, 1
        %s246 = scalar_select %p245, %s20, 1
        %s247 = smul.addr %s246, 16
        %s248 = smul.addr %s247, 8
        %s249 = scalar_lea.vmem %s0, %s248
        %p250 = pneg %p41
        %p251 = pneg %p38
        %p252 = scmp.lt.s32.totalorder %s20, 1
        %s253 = scalar_select %p252, %s20, 1
        %s254 = smul.addr %s253, 4
        %s255 = scalar_lea.vmem %s1, %s254
        %p256 = pneg %p67
        %p257 = pneg %p64
        %s258 = sand.u32 %s80, 1
        %s259 = scalar_lea.sflag [#allocation3], %s258
        %s260 = sand.u32 %s80, 1
        %s261 = scalar_lea.vmem [#allocation2], %s260
        %p262 = pneg %p93
        %p263 = pneg %p90
        %p264 = scmp.lt.s32.totalorder %s20, 1
        %s265 = scalar_select %p264, %s20, 1
        %s266 = smul.addr %s265, 16
        %s267 = smul.addr %s266, 8
        %s268 = scalar_lea.vmem %s3, %s267
        %p269 = pneg %p119
        %p270 = pneg %p116
        %p271 = pneg %p145
        %p272 = pneg %p142
        %p273 = scmp.lt.s32.totalorder %s20, 1
        %s274 = scalar_select %p273, %s20, 1
        %s275 = scalar_lea.vmem %s4, %s274
        %p276 = pneg %p171
        %p277 = pneg %p168
        %p278 = scmp.lt.s32.totalorder %s20, 1
        %s279 = scalar_select %p278, %s20, 1
        %s280 = scalar_lea.vmem %s5, %s279
        %p281 = scmp.lt.s32.totalorder %s20, 1
        %s282 = scalar_select %p281, %s20, 1
        %s283 = smul.addr %s282, 16
        %s284 = smul.addr %s283, 8
        %s285 = scalar_lea.vmem %s0, %s284
        %p286 = scmp.lt.s32.totalorder %s20, 1
        %s287 = scalar_select %p286, %s20, 1
        %s288 = smul.addr %s287, 4
        %s289 = scalar_lea.vmem %s1, %s288
        %p290 = scmp.lt.s32.totalorder %s20, 1
        %s291 = scalar_select %p290, %s20, 1
        %s292 = smul.addr %s291, 16
        %s293 = smul.addr %s292, 8
        %s294 = scalar_lea.vmem %s3, %s293
        %p295 = scmp.lt.s32.totalorder %s20, 1
        %s296 = scalar_select %p295, %s20, 1
        %s297 = scalar_lea.vmem %s4, %s296
        %p298 = scmp.lt.s32.totalorder %s20, 1
        %s299 = scalar_select %p298, %s20, 1
        %s300 = scalar_lea.vmem %s5, %s299
        %v301 = vld [vmem:[%s285] sm:$0xff]
        %v302 = vld [vmem:[%s285 + $0x8] sm:$0xff]
        %v303 = vld [vmem:[%s285 + $0x10] sm:$0xff]
        %v304 = vld [vmem:[%s285 + $0x18] sm:$0xff]
        %v305 = vld [vmem:[%s285 + $0x20] sm:$0xff]
        %v306 = vld [vmem:[%s285 + $0x28] sm:$0xff]
        %v307 = vld [vmem:[%s285 + $0x30] sm:$0xff]
        %v308 = vld [vmem:[%s285 + $0x38] sm:$0xff]
        %v309 = vld [vmem:[%s285 + $0x40] sm:$0xff]
        %v310 = vld [vmem:[%s285 + $0x48] sm:$0xff]
        %v311 = vld [vmem:[%s285 + $0x50] sm:$0xff]
        %v312 = vld [vmem:[%s285 + $0x58] sm:$0xff]
        %v313 = vld [vmem:[%s285 + $0x60] sm:$0xff]
        %v314 = vld [vmem:[%s285 + $0x68] sm:$0xff]
        %v315 = vld [vmem:[%s285 + $0x70] sm:$0xff]
        %v316 = vld [vmem:[%s285 + $0x78] sm:$0xff]
        %v317 = vld [vmem:[%s289] sm:$0x7]
        %v318 = vld [vmem:[%s240] sm:$0x1]
        %v319 = vld [vmem:[%s294] sm:$0xff]
        %v320 = vld [vmem:[%s294 + $0x8] sm:$0xff]
        %v321 = vld [vmem:[%s294 + $0x10] sm:$0xff]
        %v322 = vld [vmem:[%s294 + $0x18] sm:$0xff]
        %v323 = vld [vmem:[%s294 + $0x20] sm:$0xff]
        %v324 = vld [vmem:[%s294 + $0x28] sm:$0xff]
        %v325 = vld [vmem:[%s294 + $0x30] sm:$0xff]
        %v326 = vld [vmem:[%s294 + $0x38] sm:$0xff]
        %v327 = vld [vmem:[%s294 + $0x40] sm:$0xff]
        %v328 = vld [vmem:[%s294 + $0x48] sm:$0xff]
        %v329 = vld [vmem:[%s294 + $0x50] sm:$0xff]
        %v330 = vld [vmem:[%s294 + $0x58] sm:$0xff]
        %v331 = vld [vmem:[%s294 + $0x60] sm:$0xff]
        %v332 = vld [vmem:[%s294 + $0x68] sm:$0xff]
        %v333 = vld [vmem:[%s294 + $0x70] sm:$0xff]
        %v334 = vld [vmem:[%s294 + $0x78] sm:$0xff]
        %336 = vset.pattern.permute.xlu0 0
        %337 = vperm.xlu0 %336, %v301
        %v338 = vpop.permute.xlu0 %337
        %341 = vset.pattern.permute.xlu0 0
        %342 = vperm.xlu0 %341, %v302
        %v343 = vpop.permute.xlu0 %342
        %346 = vset.pattern.permute.xlu0 0
        %347 = vperm.xlu0 %346, %v303
        %v348 = vpop.permute.xlu0 %347
        %351 = vset.pattern.permute.xlu0 0
        %352 = vperm.xlu0 %351, %v304
        %v353 = vpop.permute.xlu0 %352
        %356 = vset.pattern.permute.xlu0 0
        %357 = vperm.xlu0 %356, %v305
        %v358 = vpop.permute.xlu0 %357
        %361 = vset.pattern.permute.xlu0 0
        %362 = vperm.xlu0 %361, %v306
        %v363 = vpop.permute.xlu0 %362
        %366 = vset.pattern.permute.xlu0 0
        %367 = vperm.xlu0 %366, %v307
        %v368 = vpop.permute.xlu0 %367
        %371 = vset.pattern.permute.xlu0 0
        %372 = vperm.xlu0 %371, %v308
        %v373 = vpop.permute.xlu0 %372
        %376 = vset.pattern.permute.xlu0 0
        %377 = vperm.xlu0 %376, %v309
        %v378 = vpop.permute.xlu0 %377
        %381 = vset.pattern.permute.xlu0 0
        %382 = vperm.xlu0 %381, %v310
        %v383 = vpop.permute.xlu0 %382
        %386 = vset.pattern.permute.xlu0 0
        %387 = vperm.xlu0 %386, %v311
        %v388 = vpop.permute.xlu0 %387
        %391 = vset.pattern.permute.xlu0 0
        %392 = vperm.xlu0 %391, %v312
        %v393 = vpop.permute.xlu0 %392
        %396 = vset.pattern.permute.xlu0 0
        %397 = vperm.xlu0 %396, %v313
        %v398 = vpop.permute.xlu0 %397
        %401 = vset.pattern.permute.xlu0 0
        %402 = vperm.xlu0 %401, %v314
        %v403 = vpop.permute.xlu0 %402
        %406 = vset.pattern.permute.xlu0 0
        %407 = vperm.xlu0 %406, %v315
        %v408 = vpop.permute.xlu0 %407
        %411 = vset.pattern.permute.xlu0 0
        %412 = vperm.xlu0 %411, %v316
        %v413 = vpop.permute.xlu0 %412
        %v415 = vlaneseq
        %v416 = vshrl.u32 %v415, 7
        %v417 = vsub.s32 0, %v416
        %v418 = vrot.slane %v317, %v417
        %v419 = vsub.f32 %v338, %v418
        %v420 = vsub.f32 %v343, %v418
        %v421 = vsub.f32 %v348, %v418
        %v422 = vsub.f32 %v353, %v418
        %v423 = vsub.f32 %v358, %v418
        %v424 = vsub.f32 %v363, %v418
        %v425 = vsub.f32 %v368, %v418
        %v426 = vsub.f32 %v373, %v418
        %v427 = vsub.f32 %v378, %v418
        %v428 = vsub.f32 %v383, %v418
        %v429 = vsub.f32 %v388, %v418
        %v430 = vsub.f32 %v393, %v418
        %v431 = vsub.f32 %v398, %v418
        %v432 = vsub.f32 %v403, %v418
        %v433 = vsub.f32 %v408, %v418
        %v434 = vsub.f32 %v413, %v418
        %435 = vset.pattern.permute.xlu0 1
        %436 = vperm.xlu0 %435, %v301
        %v437 = vpop.permute.xlu0 %436
        %439 = vset.pattern.permute.xlu0 1
        %440 = vperm.xlu0 %439, %v302
        %v441 = vpop.permute.xlu0 %440
        %443 = vset.pattern.permute.xlu0 1
        %444 = vperm.xlu0 %443, %v303
        %v445 = vpop.permute.xlu0 %444
        %447 = vset.pattern.permute.xlu0 1
        %448 = vperm.xlu0 %447, %v304
        %v449 = vpop.permute.xlu0 %448
        %451 = vset.pattern.permute.xlu0 1
        %452 = vperm.xlu0 %451, %v305
        %v453 = vpop.permute.xlu0 %452
        %455 = vset.pattern.permute.xlu0 1
        %456 = vperm.xlu0 %455, %v306
        %v457 = vpop.permute.xlu0 %456
        %459 = vset.pattern.permute.xlu0 1
        %460 = vperm.xlu0 %459, %v307
        %v461 = vpop.permute.xlu0 %460
        %463 = vset.pattern.permute.xlu0 1
        %464 = vperm.xlu0 %463, %v308
        %v465 = vpop.permute.xlu0 %464
        %467 = vset.pattern.permute.xlu0 1
        %468 = vperm.xlu0 %467, %v309
        %v469 = vpop.permute.xlu0 %468
        %471 = vset.pattern.permute.xlu0 1
        %472 = vperm.xlu0 %471, %v310
        %v473 = vpop.permute.xlu0 %472
        %475 = vset.pattern.permute.xlu0 1
        %476 = vperm.xlu0 %475, %v311
        %v477 = vpop.permute.xlu0 %476
        %479 = vset.pattern.permute.xlu0 1
        %480 = vperm.xlu0 %479, %v312
        %v481 = vpop.permute.xlu0 %480
        %483 = vset.pattern.permute.xlu0 1
        %484 = vperm.xlu0 %483, %v313
        %v485 = vpop.permute.xlu0 %484
        %487 = vset.pattern.permute.xlu0 1
        %488 = vperm.xlu0 %487, %v314
        %v489 = vpop.permute.xlu0 %488
        %491 = vset.pattern.permute.xlu0 1
        %492 = vperm.xlu0 %491, %v315
        %v493 = vpop.permute.xlu0 %492
        %495 = vset.pattern.permute.xlu0 1
        %496 = vperm.xlu0 %495, %v316
        %v497 = vpop.permute.xlu0 %496
        %v499 = vlaneseq
        %v500 = vshrl.u32 %v499, 7
        %v501 = vsub.s32 1, %v500
        %v502 = vrot.slane %v317, %v501
        %v503 = vsub.f32 %v437, %v502
        %v504 = vsub.f32 %v441, %v502
        %v505 = vsub.f32 %v445, %v502
        %v506 = vsub.f32 %v449, %v502
        %v507 = vsub.f32 %v453, %v502
        %v508 = vsub.f32 %v457, %v502
        %v509 = vsub.f32 %v461, %v502
        %v510 = vsub.f32 %v465, %v502
        %v511 = vsub.f32 %v469, %v502
        %v512 = vsub.f32 %v473, %v502
        %v513 = vsub.f32 %v477, %v502
        %v514 = vsub.f32 %v481, %v502
        %v515 = vsub.f32 %v485, %v502
        %v516 = vsub.f32 %v489, %v502
        %v517 = vsub.f32 %v493, %v502
        %v518 = vsub.f32 %v497, %v502
        %519 = vset.pattern.permute.xlu0 2
        %520 = vperm.xlu0 %519, %v301
        %v521 = vpop.permute.xlu0 %520
        %523 = vset.pattern.permute.xlu0 2
        %524 = vperm.xlu0 %523, %v302
        %v525 = vpop.permute.xlu0 %524
        %527 = vset.pattern.permute.xlu0 2
        %528 = vperm.xlu0 %527, %v303
        %v529 = vpop.permute.xlu0 %528
        %531 = vset.pattern.permute.xlu0 2
        %532 = vperm.xlu0 %531, %v304
        %v533 = vpop.permute.xlu0 %532
        %535 = vset.pattern.permute.xlu0 2
        %536 = vperm.xlu0 %535, %v305
        %v537 = vpop.permute.xlu0 %536
        %539 = vset.pattern.permute.xlu0 2
        %540 = vperm.xlu0 %539, %v306
        %v541 = vpop.permute.xlu0 %540
        %543 = vset.pattern.permute.xlu0 2
        %544 = vperm.xlu0 %543, %v307
        %v545 = vpop.permute.xlu0 %544
        %547 = vset.pattern.permute.xlu0 2
        %548 = vperm.xlu0 %547, %v308
        %v549 = vpop.permute.xlu0 %548
        %551 = vset.pattern.permute.xlu0 2
        %552 = vperm.xlu0 %551, %v309
        %v553 = vpop.permute.xlu0 %552
        %555 = vset.pattern.permute.xlu0 2
        %556 = vperm.xlu0 %555, %v310
        %v557 = vpop.permute.xlu0 %556
        %559 = vset.pattern.permute.xlu0 2
        %560 = vperm.xlu0 %559, %v311
        %v561 = vpop.permute.xlu0 %560
        %563 = vset.pattern.permute.xlu0 2
        %564 = vperm.xlu0 %563, %v312
        %v565 = vpop.permute.xlu0 %564
        %567 = vset.pattern.permute.xlu0 2
        %568 = vperm.xlu0 %567, %v313
        %v569 = vpop.permute.xlu0 %568
        %571 = vset.pattern.permute.xlu0 2
        %572 = vperm.xlu0 %571, %v314
        %v573 = vpop.permute.xlu0 %572
        %575 = vset.pattern.permute.xlu0 2
        %576 = vperm.xlu0 %575, %v315
        %v577 = vpop.permute.xlu0 %576
        %579 = vset.pattern.permute.xlu0 2
        %580 = vperm.xlu0 %579, %v316
        %v581 = vpop.permute.xlu0 %580
        %v583 = vlaneseq
        %v584 = vshrl.u32 %v583, 7
        %v585 = vsub.s32 2, %v584
        %v586 = vrot.slane %v317, %v585
        %v587 = vsub.f32 %v521, %v586
        %v588 = vsub.f32 %v525, %v586
        %v589 = vsub.f32 %v529, %v586
        %v590 = vsub.f32 %v533, %v586
        %v591 = vsub.f32 %v537, %v586
        %v592 = vsub.f32 %v541, %v586
        %v593 = vsub.f32 %v545, %v586
        %v594 = vsub.f32 %v549, %v586
        %v595 = vsub.f32 %v553, %v586
        %v596 = vsub.f32 %v557, %v586
        %v597 = vsub.f32 %v561, %v586
        %v598 = vsub.f32 %v565, %v586
        %v599 = vsub.f32 %v569, %v586
        %v600 = vsub.f32 %v573, %v586
        %v601 = vsub.f32 %v577, %v586
        %v602 = vsub.f32 %v581, %v586
        %v603 = vmul.f32 %v419, %v419
        %v604 = vmul.f32 %v420, %v420
        %v605 = vmul.f32 %v421, %v421
        %v606 = vmul.f32 %v422, %v422
        %v607 = vmul.f32 %v423, %v423
        %v608 = vmul.f32 %v424, %v424
        %v609 = vmul.f32 %v425, %v425
        %v610 = vmul.f32 %v426, %v426
        %v611 = vmul.f32 %v427, %v427
        %v612 = vmul.f32 %v428, %v428
        %v613 = vmul.f32 %v429, %v429
        %v614 = vmul.f32 %v430, %v430
        %v615 = vmul.f32 %v431, %v431
        %v616 = vmul.f32 %v432, %v432
        %v617 = vmul.f32 %v433, %v433
        %v618 = vmul.f32 %v434, %v434
        %v619 = vmul.f32 %v503, %v503
        %v620 = vmul.f32 %v504, %v504
        %v621 = vmul.f32 %v505, %v505
        %v622 = vmul.f32 %v506, %v506
        %v623 = vmul.f32 %v507, %v507
        %v624 = vmul.f32 %v508, %v508
        %v625 = vmul.f32 %v509, %v509
        %v626 = vmul.f32 %v510, %v510
        %v627 = vmul.f32 %v511, %v511
        %v628 = vmul.f32 %v512, %v512
        %v629 = vmul.f32 %v513, %v513
        %v630 = vmul.f32 %v514, %v514
        %v631 = vmul.f32 %v515, %v515
        %v632 = vmul.f32 %v516, %v516
        %v633 = vmul.f32 %v517, %v517
        %v634 = vmul.f32 %v518, %v518
        %v635 = vadd.f32 %v603, %v619
        %v636 = vadd.f32 %v604, %v620
        %v637 = vadd.f32 %v605, %v621
        %v638 = vadd.f32 %v606, %v622
        %v639 = vadd.f32 %v607, %v623
        %v640 = vadd.f32 %v608, %v624
        %v641 = vadd.f32 %v609, %v625
        %v642 = vadd.f32 %v610, %v626
        %v643 = vadd.f32 %v611, %v627
        %v644 = vadd.f32 %v612, %v628
        %v645 = vadd.f32 %v613, %v629
        %v646 = vadd.f32 %v614, %v630
        %v647 = vadd.f32 %v615, %v631
        %v648 = vadd.f32 %v616, %v632
        %v649 = vadd.f32 %v617, %v633
        %v650 = vadd.f32 %v618, %v634
        %v651 = vmul.f32 %v587, %v587
        %v652 = vmul.f32 %v588, %v588
        %v653 = vmul.f32 %v589, %v589
        %v654 = vmul.f32 %v590, %v590
        %v655 = vmul.f32 %v591, %v591
        %v656 = vmul.f32 %v592, %v592
        %v657 = vmul.f32 %v593, %v593
        %v658 = vmul.f32 %v594, %v594
        %v659 = vmul.f32 %v595, %v595
        %v660 = vmul.f32 %v596, %v596
        %v661 = vmul.f32 %v597, %v597
        %v662 = vmul.f32 %v598, %v598
        %v663 = vmul.f32 %v599, %v599
        %v664 = vmul.f32 %v600, %v600
        %v665 = vmul.f32 %v601, %v601
        %v666 = vmul.f32 %v602, %v602
        %v667 = vadd.f32 %v635, %v651
        %v668 = vadd.f32 %v636, %v652
        %v669 = vadd.f32 %v637, %v653
        %v670 = vadd.f32 %v638, %v654
        %v671 = vadd.f32 %v639, %v655
        %v672 = vadd.f32 %v640, %v656
        %v673 = vadd.f32 %v641, %v657
        %v674 = vadd.f32 %v642, %v658
        %v675 = vadd.f32 %v643, %v659
        %v676 = vadd.f32 %v644, %v660
        %v677 = vadd.f32 %v645, %v661
        %v678 = vadd.f32 %v646, %v662
        %v679 = vadd.f32 %v647, %v663
        %v680 = vadd.f32 %v648, %v664
        %v681 = vadd.f32 %v649, %v665
        %v682 = vadd.f32 %v650, %v666
        %683 = vmin.xlane.f32.xlu0 %v667
        %v684 = vpop.xlane.xlu0 %683
        %685 = vmin.xlane.f32.xlu0 %v668
        %v686 = vpop.xlane.xlu0 %685
        %687 = vmin.xlane.f32.xlu0 %v669
        %v688 = vpop.xlane.xlu0 %687
        %689 = vmin.xlane.f32.xlu0 %v670
        %v690 = vpop.xlane.xlu0 %689
        %691 = vmin.xlane.f32.xlu0 %v671
        %v692 = vpop.xlane.xlu0 %691
        %693 = vmin.xlane.f32.xlu0 %v672
        %v694 = vpop.xlane.xlu0 %693
        %695 = vmin.xlane.f32.xlu0 %v673
        %v696 = vpop.xlane.xlu0 %695
        %697 = vmin.xlane.f32.xlu0 %v674
        %v698 = vpop.xlane.xlu0 %697
        %699 = vmin.xlane.f32.xlu0 %v675
        %v700 = vpop.xlane.xlu0 %699
        %701 = vmin.xlane.f32.xlu0 %v676
        %v702 = vpop.xlane.xlu0 %701
        %703 = vmin.xlane.f32.xlu0 %v677
        %v704 = vpop.xlane.xlu0 %703
        %705 = vmin.xlane.f32.xlu0 %v678
        %v706 = vpop.xlane.xlu0 %705
        %707 = vmin.xlane.f32.xlu0 %v679
        %v708 = vpop.xlane.xlu0 %707
        %709 = vmin.xlane.f32.xlu0 %v680
        %v710 = vpop.xlane.xlu0 %709
        %711 = vmin.xlane.f32.xlu0 %v681
        %v712 = vpop.xlane.xlu0 %711
        %713 = vmin.xlane.f32.xlu0 %v682
        %v714 = vpop.xlane.xlu0 %713
        %v715 = vmin.f32 %v667, %v671
        %v716 = vmin.f32 %v668, %v672
        %v717 = vmin.f32 %v669, %v673
        %v718 = vmin.f32 %v670, %v674
        %v719 = vmin.f32 %v715, %v675
        %v720 = vmin.f32 %v716, %v676
        %v721 = vmin.f32 %v717, %v677
        %v722 = vmin.f32 %v718, %v678
        %v723 = vmin.f32 %v719, %v679
        %v724 = vmin.f32 %v720, %v680
        %v725 = vmin.f32 %v721, %v681
        %v726 = vmin.f32 %v722, %v682
        %v727 = vmin.f32 %v723, %v724
        %v728 = vmin.f32 %v725, %v726
        %v729 = vmin.f32 %v727, %v728
        %v730 = vrot.slane %v729, 4
        %v731 = vmin.f32 %v729, %v730
        %v732 = vrot.slane %v731, 2
        %v733 = vmin.f32 %v731, %v732
        %v734 = vrot.slane %v733, 1
        %v735 = vmin.f32 %v733, %v734
        %v736 = vadd.f32 %v684, %v686
        %v737 = vadd.f32 %v736, %v688
        %v738 = vadd.f32 %v737, %v690
        %v739 = vadd.f32 %v738, %v692
        %v740 = vadd.f32 %v739, %v694
        %v741 = vadd.f32 %v740, %v696
        %v742 = vadd.f32 %v741, %v698
        %v743 = vadd.f32 %v742, %v700
        %v744 = vadd.f32 %v743, %v702
        %v745 = vadd.f32 %v744, %v704
        %v746 = vadd.f32 %v745, %v706
        %v747 = vadd.f32 %v746, %v708
        %v748 = vadd.f32 %v747, %v710
        %v749 = vadd.f32 %v748, %v712
        %v750 = vadd.f32 %v749, %v714
        %v751 = vrot.slane %v750, 4
        %v752 = vadd.f32 %v750, %v751
        %v753 = vrot.slane %v752, 2
        %v754 = vadd.f32 %v752, %v753
        %v755 = vrot.slane %v754, 1
        %v756 = vadd.f32 %v754, %v755
        %v757 = vrcp.pop 128.0
        %v758 = vmul.f32 %v756, %v757
        %759 = vadd.xlane.f32.xlu0 %v735
        %v760 = vpop.xlane.xlu0 %759
        %v761 = vmul.f32 %v760, %v757
        %v762 = vadd.f32 %v758, %v761
        %vm763 = vcmask 0
        %764 = vst.msk [vmem:[%s297] sm:$0x1] %vm763, %v762
        %v765 = vlaneseq
        %v766 = vand.u32 %v765, 127
        %v767 = vcvt.s32.f32 %v766
        %vm768 = vcmp.eq.f32.partialorder %v667, %v684
        %vm769 = vcmp.eq.f32.partialorder %v668, %v686
        %vm770 = vcmp.eq.f32.partialorder %v669, %v688
        %vm771 = vcmp.eq.f32.partialorder %v670, %v690
        %vm772 = vcmp.eq.f32.partialorder %v671, %v692
        %vm773 = vcmp.eq.f32.partialorder %v672, %v694
        %vm774 = vcmp.eq.f32.partialorder %v673, %v696
        %vm775 = vcmp.eq.f32.partialorder %v674, %v698
        %vm776 = vcmp.eq.f32.partialorder %v675, %v700
        %vm777 = vcmp.eq.f32.partialorder %v676, %v702
        %vm778 = vcmp.eq.f32.partialorder %v677, %v704
        %vm779 = vcmp.eq.f32.partialorder %v678, %v706
        %vm780 = vcmp.eq.f32.partialorder %v679, %v708
        %vm781 = vcmp.eq.f32.partialorder %v680, %v710
        %vm782 = vcmp.eq.f32.partialorder %v681, %v712
        %vm783 = vcmp.eq.f32.partialorder %v682, %v714
        %v784 = vsel %vm768, %v767, 128.0
        %v785 = vsel %vm769, %v767, 128.0
        %v786 = vsel %vm770, %v767, 128.0
        %v787 = vsel %vm771, %v767, 128.0
        %v788 = vsel %vm772, %v767, 128.0
        %v789 = vsel %vm773, %v767, 128.0
        %v790 = vsel %vm774, %v767, 128.0
        %v791 = vsel %vm775, %v767, 128.0
        %v792 = vsel %vm776, %v767, 128.0
        %v793 = vsel %vm777, %v767, 128.0
        %v794 = vsel %vm778, %v767, 128.0
        %v795 = vsel %vm779, %v767, 128.0
        %v796 = vsel %vm780, %v767, 128.0
        %v797 = vsel %vm781, %v767, 128.0
        %v798 = vsel %vm782, %v767, 128.0
        %v799 = vsel %vm783, %v767, 128.0
        %800 = vmin.xlane.f32.xlu0 %v784
        %v801 = vpop.xlane.xlu0 %800
        %802 = vmin.xlane.f32.xlu0 %v785
        %v803 = vpop.xlane.xlu0 %802
        %804 = vmin.xlane.f32.xlu0 %v786
        %v805 = vpop.xlane.xlu0 %804
        %806 = vmin.xlane.f32.xlu0 %v787
        %v807 = vpop.xlane.xlu0 %806
        %808 = vmin.xlane.f32.xlu0 %v788
        %v809 = vpop.xlane.xlu0 %808
        %810 = vmin.xlane.f32.xlu0 %v789
        %v811 = vpop.xlane.xlu0 %810
        %812 = vmin.xlane.f32.xlu0 %v790
        %v813 = vpop.xlane.xlu0 %812
        %814 = vmin.xlane.f32.xlu0 %v791
        %v815 = vpop.xlane.xlu0 %814
        %816 = vmin.xlane.f32.xlu0 %v792
        %v817 = vpop.xlane.xlu0 %816
        %818 = vmin.xlane.f32.xlu0 %v793
        %v819 = vpop.xlane.xlu0 %818
        %820 = vmin.xlane.f32.xlu0 %v794
        %v821 = vpop.xlane.xlu0 %820
        %822 = vmin.xlane.f32.xlu0 %v795
        %v823 = vpop.xlane.xlu0 %822
        %824 = vmin.xlane.f32.xlu0 %v796
        %v825 = vpop.xlane.xlu0 %824
        %826 = vmin.xlane.f32.xlu0 %v797
        %v827 = vpop.xlane.xlu0 %826
        %828 = vmin.xlane.f32.xlu0 %v798
        %v829 = vpop.xlane.xlu0 %828
        %830 = vmin.xlane.f32.xlu0 %v799
        %v831 = vpop.xlane.xlu0 %830
        %vm832 = vcmp.eq.f32.partialorder %v767, %v801
        %vm833 = vcmp.eq.f32.partialorder %v767, %v803
        %vm834 = vcmp.eq.f32.partialorder %v767, %v805
        %vm835 = vcmp.eq.f32.partialorder %v767, %v807
        %vm836 = vcmp.eq.f32.partialorder %v767, %v809
        %vm837 = vcmp.eq.f32.partialorder %v767, %v811
        %vm838 = vcmp.eq.f32.partialorder %v767, %v813
        %vm839 = vcmp.eq.f32.partialorder %v767, %v815
        %vm840 = vcmp.eq.f32.partialorder %v767, %v817
        %vm841 = vcmp.eq.f32.partialorder %v767, %v819
        %vm842 = vcmp.eq.f32.partialorder %v767, %v821
        %vm843 = vcmp.eq.f32.partialorder %v767, %v823
        %vm844 = vcmp.eq.f32.partialorder %v767, %v825
        %vm845 = vcmp.eq.f32.partialorder %v767, %v827
        %vm846 = vcmp.eq.f32.partialorder %v767, %v829
        %vm847 = vcmp.eq.f32.partialorder %v767, %v831
        %v849 = vlaneseq
        %v850 = vshrl.u32 %v849, 7
        %v851 = vsub.s32 0, %v850
        %v852 = vrot.slane %v318, %v851
        %v854 = vsel %vm832, %v852, 0.0
        %v855 = vsel %vm833, %v852, 0.0
        %v856 = vsel %vm834, %v852, 0.0
        %v857 = vsel %vm835, %v852, 0.0
        %v858 = vsel %vm836, %v852, 0.0
        %v859 = vsel %vm837, %v852, 0.0
        %v860 = vsel %vm838, %v852, 0.0
        %v861 = vsel %vm839, %v852, 0.0
        %v862 = vsel %vm840, %v852, 0.0
        %v863 = vsel %vm841, %v852, 0.0
        %v864 = vsel %vm842, %v852, 0.0
        %v865 = vsel %vm843, %v852, 0.0
        %v866 = vsel %vm844, %v852, 0.0
        %v867 = vsel %vm845, %v852, 0.0
        %v868 = vsel %vm846, %v852, 0.0
        %v869 = vsel %vm847, %v852, 0.0
        %870 = vadd.xlane.f32.xlu0 %v854
        %v871 = vpop.xlane.xlu0 %870
        %872 = vadd.xlane.f32.xlu0 %v855
        %v873 = vpop.xlane.xlu0 %872
        %874 = vadd.xlane.f32.xlu0 %v856
        %v875 = vpop.xlane.xlu0 %874
        %876 = vadd.xlane.f32.xlu0 %v857
        %v877 = vpop.xlane.xlu0 %876
        %878 = vadd.xlane.f32.xlu0 %v858
        %v879 = vpop.xlane.xlu0 %878
        %880 = vadd.xlane.f32.xlu0 %v859
        %v881 = vpop.xlane.xlu0 %880
        %882 = vadd.xlane.f32.xlu0 %v860
        %v883 = vpop.xlane.xlu0 %882
        %884 = vadd.xlane.f32.xlu0 %v861
        %v885 = vpop.xlane.xlu0 %884
        %886 = vadd.xlane.f32.xlu0 %v862
        %v887 = vpop.xlane.xlu0 %886
        %888 = vadd.xlane.f32.xlu0 %v863
        %v889 = vpop.xlane.xlu0 %888
        %890 = vadd.xlane.f32.xlu0 %v864
        %v891 = vpop.xlane.xlu0 %890
        %892 = vadd.xlane.f32.xlu0 %v865
        %v893 = vpop.xlane.xlu0 %892
        %894 = vadd.xlane.f32.xlu0 %v866
        %v895 = vpop.xlane.xlu0 %894
        %896 = vadd.xlane.f32.xlu0 %v867
        %v897 = vpop.xlane.xlu0 %896
        %898 = vadd.xlane.f32.xlu0 %v868
        %v899 = vpop.xlane.xlu0 %898
        %900 = vadd.xlane.f32.xlu0 %v869
        %v901 = vpop.xlane.xlu0 %900
        %v902 = vsub.f32 %v871, %v767
        %v903 = vsub.f32 %v873, %v767
        %v904 = vsub.f32 %v875, %v767
        %v905 = vsub.f32 %v877, %v767
        %v906 = vsub.f32 %v879, %v767
        %v907 = vsub.f32 %v881, %v767
        %v908 = vsub.f32 %v883, %v767
        %v909 = vsub.f32 %v885, %v767
        %v910 = vsub.f32 %v887, %v767
        %v911 = vsub.f32 %v889, %v767
        %v912 = vsub.f32 %v891, %v767
        %v913 = vsub.f32 %v893, %v767
        %v914 = vsub.f32 %v895, %v767
        %v915 = vsub.f32 %v897, %v767
        %v916 = vsub.f32 %v899, %v767
        %v917 = vsub.f32 %v901, %v767
        %v918 = vand.u32 2147483647, %v902
        %v919 = vand.u32 2147483647, %v903
        %v920 = vand.u32 2147483647, %v904
        %v921 = vand.u32 2147483647, %v905
        %v922 = vand.u32 2147483647, %v906
        %v923 = vand.u32 2147483647, %v907
        %v924 = vand.u32 2147483647, %v908
        %v925 = vand.u32 2147483647, %v909
        %v926 = vand.u32 2147483647, %v910
        %v927 = vand.u32 2147483647, %v911
        %v928 = vand.u32 2147483647, %v912
        %v929 = vand.u32 2147483647, %v913
        %v930 = vand.u32 2147483647, %v914
        %v931 = vand.u32 2147483647, %v915
        %v932 = vand.u32 2147483647, %v916
        %v933 = vand.u32 2147483647, %v917
        %vm934 = vcmp.lt.f32.partialorder %v918, 0.5
        %vm935 = vcmp.lt.f32.partialorder %v919, 0.5
        %vm936 = vcmp.lt.f32.partialorder %v920, 0.5
        %vm937 = vcmp.lt.f32.partialorder %v921, 0.5
        %vm938 = vcmp.lt.f32.partialorder %v922, 0.5
        %vm939 = vcmp.lt.f32.partialorder %v923, 0.5
        %vm940 = vcmp.lt.f32.partialorder %v924, 0.5
        %vm941 = vcmp.lt.f32.partialorder %v925, 0.5
        %vm942 = vcmp.lt.f32.partialorder %v926, 0.5
        %vm943 = vcmp.lt.f32.partialorder %v927, 0.5
        %vm944 = vcmp.lt.f32.partialorder %v928, 0.5
        %vm945 = vcmp.lt.f32.partialorder %v929, 0.5
        %vm946 = vcmp.lt.f32.partialorder %v930, 0.5
        %vm947 = vcmp.lt.f32.partialorder %v931, 0.5
        %vm948 = vcmp.lt.f32.partialorder %v932, 0.5
        %vm949 = vcmp.lt.f32.partialorder %v933, 0.5
        %v950 = vsel %vm934, 1, 0
        %v951 = vsel %vm935, 1, 0
        %v952 = vsel %vm936, 1, 0
        %v953 = vsel %vm937, 1, 0
        %v954 = vsel %vm938, 1, 0
        %v955 = vsel %vm939, 1, 0
        %v956 = vsel %vm940, 1, 0
        %v957 = vsel %vm941, 1, 0
        %v958 = vsel %vm942, 1, 0
        %v959 = vsel %vm943, 1, 0
        %v960 = vsel %vm944, 1, 0
        %v961 = vsel %vm945, 1, 0
        %v962 = vsel %vm946, 1, 0
        %v963 = vsel %vm947, 1, 0
        %v964 = vsel %vm948, 1, 0
        %v965 = vsel %vm949, 1, 0
        %v966 = vcvt.s32.f32 %v950
        %v967 = vcvt.s32.f32 %v951
        %v968 = vcvt.s32.f32 %v952
        %v969 = vcvt.s32.f32 %v953
        %v970 = vcvt.s32.f32 %v954
        %v971 = vcvt.s32.f32 %v955
        %v972 = vcvt.s32.f32 %v956
        %v973 = vcvt.s32.f32 %v957
        %v974 = vcvt.s32.f32 %v958
        %v975 = vcvt.s32.f32 %v959
        %v976 = vcvt.s32.f32 %v960
        %v977 = vcvt.s32.f32 %v961
        %v978 = vcvt.s32.f32 %v962
        %v979 = vcvt.s32.f32 %v963
        %v980 = vcvt.s32.f32 %v964
        %v981 = vcvt.s32.f32 %v965
        %vm982 = vcmask 97280
        %v983 = vsel %vm982, %v319, -inf
        %984 = vmax.xlane.f32.xlu0 %v983
        %v985 = vpop.xlane.xlu0 %984
        %v986 = vsel %vm982, %v320, -inf
        %987 = vmax.xlane.f32.xlu0 %v986
        %v988 = vpop.xlane.xlu0 %987
        %v989 = vsel %vm982, %v321, -inf
        %990 = vmax.xlane.f32.xlu0 %v989
        %v991 = vpop.xlane.xlu0 %990
        %v992 = vsel %vm982, %v322, -inf
        %993 = vmax.xlane.f32.xlu0 %v992
        %v994 = vpop.xlane.xlu0 %993
        %v995 = vsel %vm982, %v323, -inf
        %996 = vmax.xlane.f32.xlu0 %v995
        %v997 = vpop.xlane.xlu0 %996
        %v998 = vsel %vm982, %v324, -inf
        %999 = vmax.xlane.f32.xlu0 %v998
        %v1000 = vpop.xlane.xlu0 %999
        %v1001 = vsel %vm982, %v325, -inf
        %1002 = vmax.xlane.f32.xlu0 %v1001
        %v1003 = vpop.xlane.xlu0 %1002
        %v1004 = vsel %vm982, %v326, -inf
        %1005 = vmax.xlane.f32.xlu0 %v1004
        %v1006 = vpop.xlane.xlu0 %1005
        %v1007 = vsel %vm982, %v327, -inf
        %1008 = vmax.xlane.f32.xlu0 %v1007
        %v1009 = vpop.xlane.xlu0 %1008
        %v1010 = vsel %vm982, %v328, -inf
        %1011 = vmax.xlane.f32.xlu0 %v1010
        %v1012 = vpop.xlane.xlu0 %1011
        %v1013 = vsel %vm982, %v329, -inf
        %1014 = vmax.xlane.f32.xlu0 %v1013
        %v1015 = vpop.xlane.xlu0 %1014
        %v1016 = vsel %vm982, %v330, -inf
        %1017 = vmax.xlane.f32.xlu0 %v1016
        %v1018 = vpop.xlane.xlu0 %1017
        %v1019 = vsel %vm982, %v331, -inf
        %1020 = vmax.xlane.f32.xlu0 %v1019
        %v1021 = vpop.xlane.xlu0 %1020
        %v1022 = vsel %vm982, %v332, -inf
        %1023 = vmax.xlane.f32.xlu0 %v1022
        %v1024 = vpop.xlane.xlu0 %1023
        %v1025 = vsel %vm982, %v333, -inf
        %1026 = vmax.xlane.f32.xlu0 %v1025
        %v1027 = vpop.xlane.xlu0 %1026
        %v1028 = vsel %vm982, %v334, -inf
        %1029 = vmax.xlane.f32.xlu0 %v1028
        %v1030 = vpop.xlane.xlu0 %1029
        %v1031 = vsub.f32 %v319, %v985
        %v1032 = vsub.f32 %v320, %v988
        %v1033 = vsub.f32 %v321, %v991
        %v1034 = vsub.f32 %v322, %v994
        %v1035 = vsub.f32 %v323, %v997
        %v1036 = vsub.f32 %v324, %v1000
        %v1037 = vsub.f32 %v325, %v1003
        %v1038 = vsub.f32 %v326, %v1006
        %v1039 = vsub.f32 %v327, %v1009
        %v1040 = vsub.f32 %v328, %v1012
        %v1041 = vsub.f32 %v329, %v1015
        %v1042 = vsub.f32 %v330, %v1018
        %v1043 = vsub.f32 %v331, %v1021
        %v1044 = vsub.f32 %v332, %v1024
        %v1045 = vsub.f32 %v333, %v1027
        %v1046 = vsub.f32 %v334, %v1030
        %v1047 = vmul.f32 %v1031, 1.442695
        %v1048 = vpow.pop %v1047
        %v1049 = vmul.f32 %v1032, 1.442695
        %v1050 = vpow.pop %v1049
        %v1051 = vmul.f32 %v1033, 1.442695
        %v1052 = vpow.pop %v1051
        %v1053 = vmul.f32 %v1034, 1.442695
        %v1054 = vpow.pop %v1053
        %v1055 = vmul.f32 %v1035, 1.442695
        %v1056 = vpow.pop %v1055
        %v1057 = vmul.f32 %v1036, 1.442695
        %v1058 = vpow.pop %v1057
        %v1059 = vmul.f32 %v1037, 1.442695
        %v1060 = vpow.pop %v1059
        %v1061 = vmul.f32 %v1038, 1.442695
        %v1062 = vpow.pop %v1061
        %v1063 = vmul.f32 %v1039, 1.442695
        %v1064 = vpow.pop %v1063
        %v1065 = vmul.f32 %v1040, 1.442695
        %v1066 = vpow.pop %v1065
        %v1067 = vmul.f32 %v1041, 1.442695
        %v1068 = vpow.pop %v1067
        %v1069 = vmul.f32 %v1042, 1.442695
        %v1070 = vpow.pop %v1069
        %v1071 = vmul.f32 %v1043, 1.442695
        %v1072 = vpow.pop %v1071
        %v1073 = vmul.f32 %v1044, 1.442695
        %v1074 = vpow.pop %v1073
        %v1075 = vmul.f32 %v1045, 1.442695
        %v1076 = vpow.pop %v1075
        %v1077 = vmul.f32 %v1046, 1.442695
        %v1078 = vpow.pop %v1077
        %v1079 = vsel %vm982, %v1048, 0.0
        %1080 = vadd.xlane.f32.xlu0 %v1079
        %v1081 = vpop.xlane.xlu0 %1080
        %v1082 = vsel %vm982, %v1050, 0.0
        %1083 = vadd.xlane.f32.xlu0 %v1082
        %v1084 = vpop.xlane.xlu0 %1083
        %v1085 = vsel %vm982, %v1052, 0.0
        %1086 = vadd.xlane.f32.xlu0 %v1085
        %v1087 = vpop.xlane.xlu0 %1086
        %v1088 = vsel %vm982, %v1054, 0.0
        %1089 = vadd.xlane.f32.xlu0 %v1088
        %v1090 = vpop.xlane.xlu0 %1089
        %v1091 = vsel %vm982, %v1056, 0.0
        %1092 = vadd.xlane.f32.xlu0 %v1091
        %v1093 = vpop.xlane.xlu0 %1092
        %v1094 = vsel %vm982, %v1058, 0.0
        %1095 = vadd.xlane.f32.xlu0 %v1094
        %v1096 = vpop.xlane.xlu0 %1095
        %v1097 = vsel %vm982, %v1060, 0.0
        %1098 = vadd.xlane.f32.xlu0 %v1097
        %v1099 = vpop.xlane.xlu0 %1098
        %v1100 = vsel %vm982, %v1062, 0.0
        %1101 = vadd.xlane.f32.xlu0 %v1100
        %v1102 = vpop.xlane.xlu0 %1101
        %v1103 = vsel %vm982, %v1064, 0.0
        %1104 = vadd.xlane.f32.xlu0 %v1103
        %v1105 = vpop.xlane.xlu0 %1104
        %v1106 = vsel %vm982, %v1066, 0.0
        %1107 = vadd.xlane.f32.xlu0 %v1106
        %v1108 = vpop.xlane.xlu0 %1107
        %v1109 = vsel %vm982, %v1068, 0.0
        %1110 = vadd.xlane.f32.xlu0 %v1109
        %v1111 = vpop.xlane.xlu0 %1110
        %v1112 = vsel %vm982, %v1070, 0.0
        %1113 = vadd.xlane.f32.xlu0 %v1112
        %v1114 = vpop.xlane.xlu0 %1113
        %v1115 = vsel %vm982, %v1072, 0.0
        %1116 = vadd.xlane.f32.xlu0 %v1115
        %v1117 = vpop.xlane.xlu0 %1116
        %v1118 = vsel %vm982, %v1074, 0.0
        %1119 = vadd.xlane.f32.xlu0 %v1118
        %v1120 = vpop.xlane.xlu0 %1119
        %v1121 = vsel %vm982, %v1076, 0.0
        %1122 = vadd.xlane.f32.xlu0 %v1121
        %v1123 = vpop.xlane.xlu0 %1122
        %v1124 = vsel %vm982, %v1078, 0.0
        %1125 = vadd.xlane.f32.xlu0 %v1124
        %v1126 = vpop.xlane.xlu0 %1125
        %v1127 = vrcp.pop %v1081
        %v1128 = vmul.f32 %v1048, %v1127
        %v1129 = vrcp.pop %v1084
        %v1130 = vmul.f32 %v1050, %v1129
        %v1131 = vrcp.pop %v1087
        %v1132 = vmul.f32 %v1052, %v1131
        %v1133 = vrcp.pop %v1090
        %v1134 = vmul.f32 %v1054, %v1133
        %v1135 = vrcp.pop %v1093
        %v1136 = vmul.f32 %v1056, %v1135
        %v1137 = vrcp.pop %v1096
        %v1138 = vmul.f32 %v1058, %v1137
        %v1139 = vrcp.pop %v1099
        %v1140 = vmul.f32 %v1060, %v1139
        %v1141 = vrcp.pop %v1102
        %v1142 = vmul.f32 %v1062, %v1141
        %v1143 = vrcp.pop %v1105
        %v1144 = vmul.f32 %v1064, %v1143
        %v1145 = vrcp.pop %v1108
        %v1146 = vmul.f32 %v1066, %v1145
        %v1147 = vrcp.pop %v1111
        %v1148 = vmul.f32 %v1068, %v1147
        %v1149 = vrcp.pop %v1114
        %v1150 = vmul.f32 %v1070, %v1149
        %v1151 = vrcp.pop %v1117
        %v1152 = vmul.f32 %v1072, %v1151
        %v1153 = vrcp.pop %v1120
        %v1154 = vmul.f32 %v1074, %v1153
        %v1155 = vrcp.pop %v1123
        %v1156 = vmul.f32 %v1076, %v1155
        %v1157 = vrcp.pop %v1126
        %v1158 = vmul.f32 %v1078, %v1157
        %v1159 = vmul.f32 %v966, 0.97
        %v1160 = vmul.f32 %v967, 0.97
        %v1161 = vmul.f32 %v968, 0.97
        %v1162 = vmul.f32 %v969, 0.97
        %v1163 = vmul.f32 %v970, 0.97
        %v1164 = vmul.f32 %v971, 0.97
        %v1165 = vmul.f32 %v972, 0.97
        %v1166 = vmul.f32 %v973, 0.97
        %v1167 = vmul.f32 %v974, 0.97
        %v1168 = vmul.f32 %v975, 0.97
        %v1169 = vmul.f32 %v976, 0.97
        %v1170 = vmul.f32 %v977, 0.97
        %v1171 = vmul.f32 %v978, 0.97
        %v1172 = vmul.f32 %v979, 0.97
        %v1173 = vmul.f32 %v980, 0.97
        %v1174 = vmul.f32 %v981, 0.97
        %v1175 = vadd.f32 %v1128, 1e-06
        %v1176 = vadd.f32 %v1130, 1e-06
        %v1177 = vadd.f32 %v1132, 1e-06
        %v1178 = vadd.f32 %v1134, 1e-06
        %v1179 = vadd.f32 %v1136, 1e-06
        %v1180 = vadd.f32 %v1138, 1e-06
        %v1181 = vadd.f32 %v1140, 1e-06
        %v1182 = vadd.f32 %v1142, 1e-06
        %v1183 = vadd.f32 %v1144, 1e-06
        %v1184 = vadd.f32 %v1146, 1e-06
        %v1185 = vadd.f32 %v1148, 1e-06
        %v1186 = vadd.f32 %v1150, 1e-06
        %v1187 = vadd.f32 %v1152, 1e-06
        %v1188 = vadd.f32 %v1154, 1e-06
        %v1189 = vadd.f32 %v1156, 1e-06
        %v1190 = vadd.f32 %v1158, 1e-06
        %v1191 = vlog2.pop %v1175
        %v1192 = vmul.f32 %v1191, 0.6931472
        %v1193 = vlog2.pop %v1176
        %v1194 = vmul.f32 %v1193, 0.6931472
        %v1195 = vlog2.pop %v1177
        %v1196 = vmul.f32 %v1195, 0.6931472
        %v1197 = vlog2.pop %v1178
        %v1198 = vmul.f32 %v1197, 0.6931472
        %v1199 = vlog2.pop %v1179
        %v1200 = vmul.f32 %v1199, 0.6931472
        %v1201 = vlog2.pop %v1180
        %v1202 = vmul.f32 %v1201, 0.6931472
        %v1203 = vlog2.pop %v1181
        %v1204 = vmul.f32 %v1203, 0.6931472
        %v1205 = vlog2.pop %v1182
        %v1206 = vmul.f32 %v1205, 0.6931472
        %v1207 = vlog2.pop %v1183
        %v1208 = vmul.f32 %v1207, 0.6931472
        %v1209 = vlog2.pop %v1184
        %v1210 = vmul.f32 %v1209, 0.6931472
        %v1211 = vlog2.pop %v1185
        %v1212 = vmul.f32 %v1211, 0.6931472
        %v1213 = vlog2.pop %v1186
        %v1214 = vmul.f32 %v1213, 0.6931472
        %v1215 = vlog2.pop %v1187
        %v1216 = vmul.f32 %v1215, 0.6931472
        %v1217 = vlog2.pop %v1188
        %v1218 = vmul.f32 %v1217, 0.6931472
        %v1219 = vlog2.pop %v1189
        %v1220 = vmul.f32 %v1219, 0.6931472
        %v1221 = vlog2.pop %v1190
        %v1222 = vmul.f32 %v1221, 0.6931472
        %v1223 = vmul.f32 %v1159, %v1192
        %v1224 = vmul.f32 %v1160, %v1194
        %v1225 = vmul.f32 %v1161, %v1196
        %v1226 = vmul.f32 %v1162, %v1198
        %v1227 = vmul.f32 %v1163, %v1200
        %v1228 = vmul.f32 %v1164, %v1202
        %v1229 = vmul.f32 %v1165, %v1204
        %v1230 = vmul.f32 %v1166, %v1206
        %v1231 = vmul.f32 %v1167, %v1208
        %v1232 = vmul.f32 %v1168, %v1210
        %v1233 = vmul.f32 %v1169, %v1212
        %v1234 = vmul.f32 %v1170, %v1214
        %v1235 = vmul.f32 %v1171, %v1216
        %v1236 = vmul.f32 %v1172, %v1218
        %v1237 = vmul.f32 %v1173, %v1220
        %v1238 = vmul.f32 %v1174, %v1222
        %v1239 = vsub.f32 1.0, %v966
        %v1240 = vsub.f32 1.0, %v967
        %v1241 = vsub.f32 1.0, %v968
        %v1242 = vsub.f32 1.0, %v969
        %v1243 = vsub.f32 1.0, %v970
        %v1244 = vsub.f32 1.0, %v971
        %v1245 = vsub.f32 1.0, %v972
        %v1246 = vsub.f32 1.0, %v973
        %v1247 = vsub.f32 1.0, %v974
        %v1248 = vsub.f32 1.0, %v975
        %v1249 = vsub.f32 1.0, %v976
        %v1250 = vsub.f32 1.0, %v977
        %v1251 = vsub.f32 1.0, %v978
        %v1252 = vsub.f32 1.0, %v979
        %v1253 = vsub.f32 1.0, %v980
        %v1254 = vsub.f32 1.0, %v981
        %v1255 = vmul.f32 %v1239, 0.03
        %v1256 = vmul.f32 %v1240, 0.03
        %v1257 = vmul.f32 %v1241, 0.03
        %v1258 = vmul.f32 %v1242, 0.03
        %v1259 = vmul.f32 %v1243, 0.03
        %v1260 = vmul.f32 %v1244, 0.03
        %v1261 = vmul.f32 %v1245, 0.03
        %v1262 = vmul.f32 %v1246, 0.03
        %v1263 = vmul.f32 %v1247, 0.03
        %v1264 = vmul.f32 %v1248, 0.03
        %v1265 = vmul.f32 %v1249, 0.03
        %v1266 = vmul.f32 %v1250, 0.03
        %v1267 = vmul.f32 %v1251, 0.03
        %v1268 = vmul.f32 %v1252, 0.03
        %v1269 = vmul.f32 %v1253, 0.03
        %v1270 = vmul.f32 %v1254, 0.03
        %v1271 = vsub.f32 1.000001, %v1128
        %v1272 = vsub.f32 1.000001, %v1130
        %v1273 = vsub.f32 1.000001, %v1132
        %v1274 = vsub.f32 1.000001, %v1134
        %v1275 = vsub.f32 1.000001, %v1136
        %v1276 = vsub.f32 1.000001, %v1138
        %v1277 = vsub.f32 1.000001, %v1140
        %v1278 = vsub.f32 1.000001, %v1142
        %v1279 = vsub.f32 1.000001, %v1144
        %v1280 = vsub.f32 1.000001, %v1146
        %v1281 = vsub.f32 1.000001, %v1148
        %v1282 = vsub.f32 1.000001, %v1150
        %v1283 = vsub.f32 1.000001, %v1152
        %v1284 = vsub.f32 1.000001, %v1154
        %v1285 = vsub.f32 1.000001, %v1156
        %v1286 = vsub.f32 1.000001, %v1158
        %v1287 = vlog2.pop %v1271
        %v1288 = vmul.f32 %v1287, 0.6931472
        %v1289 = vlog2.pop %v1272
        %v1290 = vmul.f32 %v1289, 0.6931472
        %v1291 = vlog2.pop %v1273
        %v1292 = vmul.f32 %v1291, 0.6931472
        %v1293 = vlog2.pop %v1274
        %v1294 = vmul.f32 %v1293, 0.6931472
        %v1295 = vlog2.pop %v1275
        %v1296 = vmul.f32 %v1295, 0.6931472
        %v1297 = vlog2.pop %v1276
        %v1298 = vmul.f32 %v1297, 0.6931472
        %v1299 = vlog2.pop %v1277
        %v1300 = vmul.f32 %v1299, 0.6931472
        %v1301 = vlog2.pop %v1278
        %v1302 = vmul.f32 %v1301, 0.6931472
        %v1303 = vlog2.pop %v1279
        %v1304 = vmul.f32 %v1303, 0.6931472
        %v1305 = vlog2.pop %v1280
        %v1306 = vmul.f32 %v1305, 0.6931472
        %v1307 = vlog2.pop %v1281
        %v1308 = vmul.f32 %v1307, 0.6931472
        %v1309 = vlog2.pop %v1282
        %v1310 = vmul.f32 %v1309, 0.6931472
        %v1311 = vlog2.pop %v1283
        %v1312 = vmul.f32 %v1311, 0.6931472
        %v1313 = vlog2.pop %v1284
        %v1314 = vmul.f32 %v1313, 0.6931472
        %v1315 = vlog2.pop %v1285
        %v1316 = vmul.f32 %v1315, 0.6931472
        %v1317 = vlog2.pop %v1286
        %v1318 = vmul.f32 %v1317, 0.6931472
        %v1319 = vmul.f32 %v1255, %v1288
        %v1320 = vmul.f32 %v1256, %v1290
        %v1321 = vmul.f32 %v1257, %v1292
        %v1322 = vmul.f32 %v1258, %v1294
        %v1323 = vmul.f32 %v1259, %v1296
        %v1324 = vmul.f32 %v1260, %v1298
        %v1325 = vmul.f32 %v1261, %v1300
        %v1326 = vmul.f32 %v1262, %v1302
        %v1327 = vmul.f32 %v1263, %v1304
        %v1328 = vmul.f32 %v1264, %v1306
        %v1329 = vmul.f32 %v1265, %v1308
        %v1330 = vmul.f32 %v1266, %v1310
        %v1331 = vmul.f32 %v1267, %v1312
        %v1332 = vmul.f32 %v1268, %v1314
        %v1333 = vmul.f32 %v1269, %v1316
        %v1334 = vmul.f32 %v1270, %v1318
        %v1335 = vadd.f32 %v1223, %v1319
        %v1336 = vadd.f32 %v1224, %v1320
        %v1337 = vadd.f32 %v1225, %v1321
        %v1338 = vadd.f32 %v1226, %v1322
        %v1339 = vadd.f32 %v1227, %v1323
        %v1340 = vadd.f32 %v1228, %v1324
        %v1341 = vadd.f32 %v1229, %v1325
        %v1342 = vadd.f32 %v1230, %v1326
        %v1343 = vadd.f32 %v1231, %v1327
        %v1344 = vadd.f32 %v1232, %v1328
        %v1345 = vadd.f32 %v1233, %v1329
        %v1346 = vadd.f32 %v1234, %v1330
        %v1347 = vadd.f32 %v1235, %v1331
        %v1348 = vadd.f32 %v1236, %v1332
        %v1349 = vadd.f32 %v1237, %v1333
        %v1350 = vadd.f32 %v1238, %v1334
        %v1351 = vsel %vm982, %v1335, 0.0
        %1352 = vadd.xlane.f32.xlu0 %v1351
        %v1353 = vpop.xlane.xlu0 %1352
        %v1354 = vsel %vm982, %v1336, 0.0
        %1355 = vadd.xlane.f32.xlu0 %v1354
        %v1356 = vpop.xlane.xlu0 %1355
        %v1357 = vsel %vm982, %v1337, 0.0
        %1358 = vadd.xlane.f32.xlu0 %v1357
        %v1359 = vpop.xlane.xlu0 %1358
        %v1360 = vsel %vm982, %v1338, 0.0
        %1361 = vadd.xlane.f32.xlu0 %v1360
        %v1362 = vpop.xlane.xlu0 %1361
        %v1363 = vsel %vm982, %v1339, 0.0
        %1364 = vadd.xlane.f32.xlu0 %v1363
        %v1365 = vpop.xlane.xlu0 %1364
        %v1366 = vsel %vm982, %v1340, 0.0
        %1367 = vadd.xlane.f32.xlu0 %v1366
        %v1368 = vpop.xlane.xlu0 %1367
        %v1369 = vsel %vm982, %v1341, 0.0
        %1370 = vadd.xlane.f32.xlu0 %v1369
        %v1371 = vpop.xlane.xlu0 %1370
        %v1372 = vsel %vm982, %v1342, 0.0
        %1373 = vadd.xlane.f32.xlu0 %v1372
        %v1374 = vpop.xlane.xlu0 %1373
        %v1375 = vsel %vm982, %v1343, 0.0
        %1376 = vadd.xlane.f32.xlu0 %v1375
        %v1377 = vpop.xlane.xlu0 %1376
        %v1378 = vsel %vm982, %v1344, 0.0
        %1379 = vadd.xlane.f32.xlu0 %v1378
        %v1380 = vpop.xlane.xlu0 %1379
        %v1381 = vsel %vm982, %v1345, 0.0
        %1382 = vadd.xlane.f32.xlu0 %v1381
        %v1383 = vpop.xlane.xlu0 %1382
        %v1384 = vsel %vm982, %v1346, 0.0
        %1385 = vadd.xlane.f32.xlu0 %v1384
        %v1386 = vpop.xlane.xlu0 %1385
        %v1387 = vsel %vm982, %v1347, 0.0
        %1388 = vadd.xlane.f32.xlu0 %v1387
        %v1389 = vpop.xlane.xlu0 %1388
        %v1390 = vsel %vm982, %v1348, 0.0
        %1391 = vadd.xlane.f32.xlu0 %v1390
        %v1392 = vpop.xlane.xlu0 %1391
        %v1393 = vsel %vm982, %v1349, 0.0
        %1394 = vadd.xlane.f32.xlu0 %v1393
        %v1395 = vpop.xlane.xlu0 %1394
        %v1396 = vsel %vm982, %v1350, 0.0
        %1397 = vadd.xlane.f32.xlu0 %v1396
        %v1398 = vpop.xlane.xlu0 %1397
        %v1399 = vsub.f32 0.0, %v1353
        %v1400 = vsub.f32 0.0, %v1356
        %v1401 = vsub.f32 0.0, %v1359
        %v1402 = vsub.f32 0.0, %v1362
        %v1403 = vsub.f32 0.0, %v1365
        %v1404 = vsub.f32 0.0, %v1368
        %v1405 = vsub.f32 0.0, %v1371
        %v1406 = vsub.f32 0.0, %v1374
        %v1407 = vsub.f32 0.0, %v1377
        %v1408 = vsub.f32 0.0, %v1380
        %v1409 = vsub.f32 0.0, %v1383
        %v1410 = vsub.f32 0.0, %v1386
        %v1411 = vsub.f32 0.0, %v1389
        %v1412 = vsub.f32 0.0, %v1392
        %v1413 = vsub.f32 0.0, %v1395
        %v1414 = vsub.f32 0.0, %v1398
        %v1415 = vadd.f32 %v1399, %v1400
        %v1416 = vadd.f32 %v1415, %v1401
        %v1417 = vadd.f32 %v1416, %v1402
        %v1418 = vadd.f32 %v1417, %v1403
        %v1419 = vadd.f32 %v1418, %v1404
        %v1420 = vadd.f32 %v1419, %v1405
        %v1421 = vadd.f32 %v1420, %v1406
        %v1422 = vadd.f32 %v1421, %v1407
        %v1423 = vadd.f32 %v1422, %v1408
        %v1424 = vadd.f32 %v1423, %v1409
        %v1425 = vadd.f32 %v1424, %v1410
        %v1426 = vadd.f32 %v1425, %v1411
        %v1427 = vadd.f32 %v1426, %v1412
        %v1428 = vadd.f32 %v1427, %v1413
        %v1429 = vadd.f32 %v1428, %v1414
        %v1430 = vrot.slane %v1429, 4
        %v1431 = vadd.f32 %v1429, %v1430
        %v1432 = vrot.slane %v1431, 2
        %v1433 = vadd.f32 %v1431, %v1432
        %v1434 = vrot.slane %v1433, 1
        %v1435 = vadd.f32 %v1433, %v1434
        %v1436 = vmul.f32 %v1435, %v757
        %1437 = vst.msk [vmem:[%s300] sm:$0x1] %vm763, %v1436
        %p1438 = scmp.lt.s32.totalorder %s20, 1
        %s1439 = scalar_select %p1438, %s20, 1
        %s1440 = scalar_lea.vmem %s4, %s1439
        %p1441 = scmp.lt.s32.totalorder %s20, 1
        %s1442 = scalar_select %p1441, %s20, 1
        %s1443 = scalar_lea.vmem %s5, %s1442
        // Predicated region
        $region41: #{full_model_forward.3} parent=35 // pred_check
          %p1444 = pneg %p142
        $region42: #{full_model_forward.3} parent=35 // pred_check_branch
          %1446 = sbr.rel (%p1444) target = $region44
        $region43: #{full_model_forward.3} parent=35 // pred_region
          _
        $region44: #{full_model_forward.3} parent=35 // pred_fallthru
          _
        // Predicated region
        $region45: #{full_model_forward.3} parent=35 // pred_check
          %p1447 = pneg %p168
        $region46: #{full_model_forward.3} parent=35 // pred_check_branch
          %1449 = sbr.rel (%p1447) target = $region48
        $region47: #{full_model_forward.3} parent=35 // pred_region
          _
        $region48: #{full_model_forward.3} parent=35 // pred_fallthru
          _
      $region36: #{full_model_forward.3} parent=5 // pred_fallthru
        _
      %p1450 = scmp.le.s32.totalorder 2, %s15
      // Predicated region
      $region49: #{full_model_forward.3} parent=5 // pred_check
        %p1451 = pneg %p1450
      $region50: #{full_model_forward.3} parent=5 // pred_check_branch
        %1453 = sbr.rel (%p1451) target = $region52
      $region51: #{full_model_forward.3} parent=5 // pred_region
        %s1454 = ssub.s32 %s15, 2
        // Predicated region
        $region53: #{full_model_forward.3} parent=51 // pred_check
          %p1455 = pneg %p148
        $region54: #{full_model_forward.3} parent=51 // pred_check_branch
          %1457 = sbr.rel (%p1455) target = $region56
        $region55: #{full_model_forward.3} parent=51 // pred_region
          %p1458 = scmp.lt.s32.totalorder %s21, 1
          %s1459 = scalar_select %p1458, %s21, 1
          %s1460 = scalar_lea.vmem %s4, %s1459
        $region56: #{full_model_forward.3} parent=51 // pred_fallthru
          _
        // Predicated region
        $region57: #{full_model_forward.3} parent=51 // pred_check
          %p1461 = pneg %p174
        $region58: #{full_model_forward.3} parent=51 // pred_check_branch
          %1463 = sbr.rel (%p1461) target = $region60
        $region59: #{full_model_forward.3} parent=51 // pred_region
          %p1464 = scmp.lt.s32.totalorder %s21, 1
          %s1465 = scalar_select %p1464, %s21, 1
          %s1466 = scalar_lea.vmem %s5, %s1465
        $region60: #{full_model_forward.3} parent=51 // pred_fallthru
          _
      $region52: #{full_model_forward.3} parent=5 // pred_fallthru
        _
    $region6: #{full_model_forward.3} parent=1 // loop_footer
      %s19 = sadd.s32 1, %s15
    $region7: #{full_model_forward.3} parent=1 // loop_footer_branch
      %14 = sbr.rel target = $region3
    $region8: #{full_model_forward.3} parent=1 // loop_exit
      _
    %1467 = vsyncpa [#allocation3], 1
    %s1468 = scalar_lea.sflag [#allocation3], 1
    %1469 = vsyncpa %s1468, 1

</llo_original>
